<compile_context>
chip_gen: v7x
topology: tpu7x:2x2x1
jax: 0.10.0
libtpu: 0.0.40
codegen_flags: <defaults>
</compile_context>

<pallas_src>
import functools

import jax
import jax.numpy as jnp
from jax.experimental import pallas as pl
from jax.experimental.pallas import tpu as pltpu


def basic_block_kernel(x_ref, w1_ref, b1_ref, w2_ref, b2_ref,
                       wfc1_ref, wfc2_ref, pool_ref, mlf_ref, mrf_ref,
                       out_ref, tap_ref):
    """One group of NB images per grid step.

    x_ref/out_ref: (NB, C, H*W) f32.  tap_ref: (3C, NB*H*W) bf16 scratch whose
    lane axis is image-major (image n occupies lanes [n*HW, (n+1)*HW)).
    """
    NB, C, HW = x_ref.shape
    NBHW = NB * HW

    # Full-width {0,1} edge masks (constant inputs): 0 where the (w-1)/(w+1)
    # neighbour would cross an H-row (or image) boundary.
    mlf = mlf_ref[...]                       # (1, NB*HW)
    mrf = mrf_ref[...]                       # (1, NB*HW)
    # Per-image masks = first HW lanes (mask pattern has period W | HW).
    ml = mlf_ref[:, :HW]                     # (1, HW)
    mr = mrf_ref[:, :HW]                     # (1, HW)

    # ---- conv1 taps -> scratch, images side-by-side on the lane axis -------
    # Per-image loop (static unroll) keeps live ranges small; the sliced
    # stores do the (image, channel) -> (channel, image*HW) transpose on the
    # store path and cast to bf16 there.
    for n in range(NB):
        xn = x_ref[n]                                            # (C, HW) f32
        lo, hi = n * HW, (n + 1) * HW
        tap_ref[0:C, lo:hi] = (ml * pltpu.roll(xn, shift=1, axis=1)
                               ).astype(jnp.bfloat16)            # x[w-1]
        tap_ref[C:2 * C, lo:hi] = xn.astype(jnp.bfloat16)        # x[w]
        tap_ref[2 * C:3 * C, lo:hi] = (mr * pltpu.roll(xn, shift=HW - 1, axis=1)
                                       ).astype(jnp.bfloat16)    # x[w+1]

    # ---- conv1 (1,3) as ONE wide MXU matmul; BN1 scale folded into w1 ------
    y1 = jnp.dot(w1_ref[...], tap_ref[...],
                 preferred_element_type=jnp.float32)             # (C, NB*HW)
    h = jnp.maximum(y1 + b1_ref[...], 0.0)                       # bias + relu
    # TODO(synk): nn.Dropout(p=0.25) is identity in eval mode; training-mode
    # random masking (and BN batch statistics) are not implemented.

    # ---- conv2 taps: h is already channel-major / lane-dense -> 3 wide stores
    tap_ref[0:C, :] = (mlf * pltpu.roll(h, shift=1, axis=1)).astype(jnp.bfloat16)
    tap_ref[C:2 * C, :] = h.astype(jnp.bfloat16)
    tap_ref[2 * C:3 * C, :] = (mrf * pltpu.roll(h, shift=NBHW - 1, axis=1)
                               ).astype(jnp.bfloat16)

    # ---- conv2 + BN2 (scale folded into w2) --------------------------------
    y2 = jnp.dot(w2_ref[...], tap_ref[...],
                 preferred_element_type=jnp.float32)             # (C, NB*HW)
    h2 = y2 + b2_ref[...]

    # ---- SE: per-image mean via constant pooling matrix, batched FCs -------
    # s[c, n] = mean over image n's HW positions (f32 matmul keeps precision
    # and avoids any lane<->sublane relayout of h2).
    s = jnp.dot(h2, pool_ref[...], preferred_element_type=jnp.float32)  # (C, NB)
    z = jnp.maximum(jnp.dot(wfc1_ref[...], s,
                            preferred_element_type=jnp.float32), 0.0)   # (C/r, NB)
    g = jax.nn.sigmoid(jnp.dot(wfc2_ref[...], z,
                               preferred_element_type=jnp.float32))     # (C, NB)

    # ---- gate + residual add (downsample=None) + final relu, per image -----
    for n in range(NB):
        lo, hi = n * HW, (n + 1) * HW
        seg = h2[:, lo:hi] * g[:, n:n + 1]                       # lane broadcast
        out_ref[n] = jnp.maximum(seg + x_ref[n], 0.0).astype(out_ref.dtype)


def _pick_nb(n, nb_max):
    """Largest divisor of n that is <= nb_max and leaves >= 2 grid steps
    (so both v7x TensorCores get work under dimension_semantics=parallel)."""
    best = 1
    for nb in range(1, min(nb_max, n) + 1):
        if n % nb == 0 and (n // nb >= 2 or n == 1):
            best = nb
    return best


@functools.partial(jax.jit, static_argnames=("nb",))
def _forward_impl(x_nchw, params, nb):
    N, C, H, W = x_nchw.shape
    Cout = params["w1"].shape[0]
    assert Cout == C, "downsample=None path requires inplanes == planes"
    HW = H * W
    assert HW % 128 == 0, "lane-dense layout assumes H*W is a multiple of 128"
    assert N % nb == 0
    G = N // nb
    NBHW = nb * HW

    x = x_nchw.reshape(N, C, HW)             # free reshape: no transpose/pad

    # Constant {0,1} edge masks and the per-image mean-pooling matrix.
    col = jnp.arange(NBHW, dtype=jnp.int32) % W
    mlf = (col != 0).astype(jnp.float32).reshape(1, NBHW)
    mrf = (col != W - 1).astype(jnp.float32).reshape(1, NBHW)
    img = jnp.arange(NBHW, dtype=jnp.int32) // HW
    pool = (img[:, None] == jnp.arange(nb, dtype=jnp.int32)[None, :]
            ).astype(jnp.float32) / HW       # (NB*HW, NB)

    const = lambda g: (0, 0)                 # weights/consts: resident block

    # VMEM budget derived from actual block bytes (x/out double-buffered,
    # bf16 tap scratch, f32 intermediates), with a safety floor and a cap
    # well under v7x's 64 MiB physical VMEM.
    work = (2 * 2 * nb * C * HW * 4          # x + out blocks, double-buffered
            + 3 * C * NBHW * 2               # bf16 tap scratch
            + 8 * C * NBHW * 4               # f32 intermediates (h, h2, rolls)
            + 4 * NBHW * (nb + 2)            # pooling matrix + masks
            + 4 * C * (3 * C + 4))           # folded weights / biases / SE fcs
    vmem_limit = int(min(48 * 1024 * 1024, max(16 * 1024 * 1024, 2 * work)))

    out = pl.pallas_call(
        basic_block_kernel,
        out_shape=jax.ShapeDtypeStruct((N, Cout, HW), jnp.float32),
        grid=(G,),
        in_specs=[
            pl.BlockSpec((nb, C, HW), lambda g: (g, 0, 0)),   # x (per group)
            pl.BlockSpec(params["w1"].shape, const),          # (C, 3C) bf16, BN1 folded
            pl.BlockSpec(params["b1"].shape, const),          # (C, 1) f32
            pl.BlockSpec(params["w2"].shape, const),          # (C, 3C) bf16, BN2 folded
            pl.BlockSpec(params["b2"].shape, const),          # (C, 1) f32
            pl.BlockSpec(params["wfc1"].shape, const),        # (C//r, C) f32
            pl.BlockSpec(params["wfc2"].shape, const),        # (C, C//r) f32
            pl.BlockSpec(pool.shape, const),                  # (NB*HW, NB) f32
            pl.BlockSpec(mlf.shape, const),                   # (1, NB*HW) f32
            pl.BlockSpec(mrf.shape, const),                   # (1, NB*HW) f32
        ],
        out_specs=pl.BlockSpec((nb, Cout, HW), lambda g: (g, 0, 0)),
        scratch_shapes=[pltpu.VMEM((3 * C, NBHW), jnp.bfloat16)],
        compiler_params=pltpu.CompilerParams(
            dimension_semantics=("parallel",),
            vmem_limit_bytes=vmem_limit),
    )(x, params["w1"], params["b1"], params["w2"], params["b2"],
      params["wfc1"], params["wfc2"], pool, mlf, mrf)

    return out.reshape(N, Cout, H, W)


def basic_block_forward(x_nchw, params, nb_max=32):
    """x_nchw: (N, C, H, W) float32 -> (N, C, H, W) float32 (eval-mode block)."""
    nb = _pick_nb(x_nchw.shape[0], nb_max)
    return _forward_impl(x_nchw, params, nb=nb)


def make_params(key, inplanes, planes, reduction=16, eps=1e-5):
    ks = jax.random.split(key, 12)
    # conv weights, PyTorch layout (out, in, 1, 3)
    w1_t = jax.random.normal(ks[0], (planes, inplanes, 1, 3), jnp.float32) * 0.1
    w2_t = jax.random.normal(ks[1], (planes, planes, 1, 3), jnp.float32) * 0.1
    # SE fc weights, PyTorch 1x1-conv layout
    fc1_t = jax.random.normal(ks[2], (planes // reduction, planes, 1, 1), jnp.float32) * 0.1
    fc2_t = jax.random.normal(ks[3], (planes, planes // reduction, 1, 1), jnp.float32) * 0.1

    def bn(k0, k1, k2, k3, c):
        gamma = 1.0 + 0.1 * jax.random.normal(k0, (c,), jnp.float32)
        beta = 0.05 * jax.random.normal(k1, (c,), jnp.float32)
        mean = 0.1 * jax.random.normal(k2, (c,), jnp.float32)
        var = 1.0 + 0.1 * jnp.abs(jax.random.normal(k3, (c,), jnp.float32))
        scale = gamma / jnp.sqrt(var + eps)
        bias = beta - mean * scale
        return scale, bias

    s1, b1 = bn(ks[4], ks[5], ks[6], ks[7], planes)
    s2, b2 = bn(ks[8], ks[9], ks[10], ks[11], planes)

    def fold_conv(w_t, scale):
        # (Cout, Cin, 1, 3) -> (Cout, 3*Cin), columns ordered [tap, cin]:
        # tap 0 multiplies x[w-1], tap 1 x[w], tap 2 x[w+1]  (padding = 1).
        # BN scale is folded per output row in f32, THEN cast to bf16.
        cout, cin = w_t.shape[0], w_t.shape[1]
        w = jnp.transpose(w_t[:, :, 0, :], (0, 2, 1)).reshape(cout, 3 * cin)
        return (scale[:, None] * w).astype(jnp.bfloat16)

    params = {
        "w1": fold_conv(w1_t, s1),
        "w2": fold_conv(w2_t, s2),
        "b1": b1.reshape(planes, 1),
        "b2": b2.reshape(planes, 1),
        # SE fc weights stay f32: tiny, and the sigmoid gate is precision
        # sensitive (also suits v5e's f32-only VPU/EUP path).
        "wfc1": fc1_t[:, :, 0, 0],      # (C//r, C)
        "wfc2": fc2_t[:, :, 0, 0],      # (C, C//r)
    }
    torch_layout = {"w1_t": w1_t, "w2_t": w2_t, "fc1_t": fc1_t, "fc2_t": fc2_t,
                    "s1": s1, "b1": b1, "s2": s2, "b2": b2}
    return params, torch_layout


def ref_forward(x, t, *, mirror_kernel_precision=False):
    """Plain-JAX NCHW reference of the PyTorch module (eval mode).

    mirror_kernel_precision=True folds BN scales into bf16 conv weights and
    casts conv inputs to bf16 with f32 accumulation — the kernel's exact math.
    """
    def conv(a, w):
        return jax.lax.conv_general_dilated(
            a, w, window_strides=(1, 1), padding=((0, 0), (1, 1)),
            dimension_numbers=("NCHW", "OIHW", "NCHW"),
            preferred_element_type=jnp.float32)

    if mirror_kernel_precision:
        w1 = (t["s1"][:, None, None, None] * t["w1_t"]).astype(jnp.bfloat16)
        w2 = (t["s2"][:, None, None, None] * t["w2_t"]).astype(jnp.bfloat16)
        out = conv(x.astype(jnp.bfloat16), w1) + t["b1"][None, :, None, None]
        out = jnp.maximum(out, 0.0)
        out = conv(out.astype(jnp.bfloat16), w2) + t["b2"][None, :, None, None]
    else:
        out = conv(x, t["w1_t"])
        out = out * t["s1"][None, :, None, None] + t["b1"][None, :, None, None]
        out = jnp.maximum(out, 0.0)
        out = conv(out, t["w2_t"])
        out = out * t["s2"][None, :, None, None] + t["b2"][None, :, None, None]
    s = jnp.mean(out, axis=(2, 3))                              # (N, C)
    z = jnp.maximum(s @ t["fc1_t"][:, :, 0, 0].T, 0.0)
    g = jax.nn.sigmoid(z @ t["fc2_t"][:, :, 0, 0].T)
    out = out * g[:, :, None, None]
    return jnp.maximum(out + x, 0.0)


if __name__ == "__main__":
    key = jax.random.PRNGKey(0)
    kx, kp = jax.random.split(key)

    # inplanes == planes == 32 (downsample=None); H*W = 128 keeps lanes dense.
    # N=8 exercises the NB-image blocking (NB=4, grid of 2 -> both v7x TCs).
    N, C, H, W = 8, 32, 8, 16
    x = jax.random.normal(kx, (N, C, H, W), jnp.float32)

    params, torch_layout = make_params(kp, inplanes=C, planes=C)

    out = jax.block_until_ready(basic_block_forward(x, params))
    assert out.shape == (N, C, H, W)

    # Tight check against a reference that mirrors the kernel's precision
    # (BN folded into bf16 weights, bf16 conv inputs, f32 accumulation).
    ref_mirror = ref_forward(x, torch_layout, mirror_kernel_precision=True)
    err_mirror = float(jnp.max(jnp.abs(out - ref_mirror)))
    assert jnp.allclose(out, ref_mirror, rtol=2e-3, atol=2e-3), err_mirror

    # Looser check against the pure-f32 PyTorch-equivalent reference
    # (difference is only the bf16 rounding of the MXU weight/activation inputs).
    ref_f32 = ref_forward(x, torch_layout, mirror_kernel_precision=False)
    err_f32 = float(jnp.max(jnp.abs(out - ref_f32)))
    assert jnp.allclose(out, ref_f32, rtol=5e-2, atol=5e-2), err_f32

    print("KERNEL_OK")
</pallas_src>

<mosaic_0001>
module attributes {stable_mosaic.version = 11 : i64} {
  func.func @basic_block_kernel(%arg0: i32, %arg1: memref<4x32x128xf32, #tpu.memory_space<vmem>>, %arg2: memref<32x96xbf16, #tpu.memory_space<vmem>>, %arg3: memref<32x1xf32, #tpu.memory_space<vmem>>, %arg4: memref<32x96xbf16, #tpu.memory_space<vmem>>, %arg5: memref<32x1xf32, #tpu.memory_space<vmem>>, %arg6: memref<2x32xf32, #tpu.memory_space<vmem>>, %arg7: memref<32x2xf32, #tpu.memory_space<vmem>>, %arg8: memref<512x4xf32, #tpu.memory_space<vmem>>, %arg9: memref<1x512xf32, #tpu.memory_space<vmem>>, %arg10: memref<1x512xf32, #tpu.memory_space<vmem>>, %arg11: memref<4x32x128xf32, #tpu.memory_space<vmem>>, %arg12: memref<96x512xbf16, #tpu.memory_space<vmem>>) attributes {dimension_semantics = [#tpu.dimension_semantics<parallel>], iteration_bounds = array<i64: 2>, scalar_prefetch = 0 : i64, scratch_operands = 1 : i64, tpu.core_type = #tpu.core_type<tc>, window_params = [{transform_indices = @transform_0, window_bounds = array<i64: 4, 32, 128>}, {pipeline_mode = #tpu.pipeline_mode<synchronous>, transform_indices = @transform_1, window_bounds = array<i64: 32, 96>}, {pipeline_mode = #tpu.pipeline_mode<synchronous>, transform_indices = @transform_2, window_bounds = array<i64: 32, 1>}, {pipeline_mode = #tpu.pipeline_mode<synchronous>, transform_indices = @transform_3, window_bounds = array<i64: 32, 96>}, {pipeline_mode = #tpu.pipeline_mode<synchronous>, transform_indices = @transform_4, window_bounds = array<i64: 32, 1>}, {pipeline_mode = #tpu.pipeline_mode<synchronous>, transform_indices = @transform_5, window_bounds = array<i64: 2, 32>}, {pipeline_mode = #tpu.pipeline_mode<synchronous>, transform_indices = @transform_6, window_bounds = array<i64: 32, 2>}, {pipeline_mode = #tpu.pipeline_mode<synchronous>, transform_indices = @transform_7, window_bounds = array<i64: 512, 4>}, {pipeline_mode = #tpu.pipeline_mode<synchronous>, transform_indices = @transform_8, window_bounds = array<i64: 1, 512>}, {pipeline_mode = #tpu.pipeline_mode<synchronous>, transform_indices = @transform_9, window_bounds = array<i64: 1, 512>}, {transform_indices = @transform_10, window_bounds = array<i64: 4, 32, 128>}]} {
    %c0 = arith.constant 0 : index
    %c0_0 = arith.constant 0 : index
    %0 = vector.load %arg9[%c0, %c0_0] : memref<1x512xf32, #tpu.memory_space<vmem>>, vector<1x512xf32>
    %c0_1 = arith.constant 0 : index
    %c0_2 = arith.constant 0 : index
    %1 = vector.load %arg10[%c0_1, %c0_2] : memref<1x512xf32, #tpu.memory_space<vmem>>, vector<1x512xf32>
    %c0_3 = arith.constant 0 : index
    %c0_4 = arith.constant 0 : index
    %2 = vector.load %arg9[%c0_3, %c0_4] : memref<1x512xf32, #tpu.memory_space<vmem>>, vector<1x128xf32>
    %c0_5 = arith.constant 0 : index
    %c0_6 = arith.constant 0 : index
    %3 = vector.load %arg10[%c0_5, %c0_6] : memref<1x512xf32, #tpu.memory_space<vmem>>, vector<1x128xf32>
    %c0_7 = arith.constant 0 : index
    %c0_8 = arith.constant 0 : index
    %c0_9 = arith.constant 0 : index
    %4 = vector.load %arg1[%c0_7, %c0_8, %c0_9] : memref<4x32x128xf32, #tpu.memory_space<vmem>>, vector<1x32x128xf32>
    %5 = vector.shape_cast %4 : vector<1x32x128xf32> to vector<32x128xf32>
    %c1_i32 = arith.constant 1 : i32
    %6 = tpu.dynamic_rotate %5 by %c1_i32 dim 1 : vector<32x128xf32>, i32 -> vector<32x128xf32>
    %7 = vector.broadcast %2 : vector<1x128xf32> to vector<32x128xf32>
    %8 = arith.mulf %7, %6 : vector<32x128xf32>
    %9 = arith.truncf %8 : vector<32x128xf32> to vector<32x128xbf16>
    %c0_10 = arith.constant 0 : index
    %c0_11 = arith.constant 0 : index
    %10 = vector.load %arg12[%c0_10, %c0_11] : memref<96x512xbf16, #tpu.memory_space<vmem>>, vector<32x128xbf16>
    tpu.vector_store %arg12[%c0_10, %c0_11], %9 {strides = array<i32>} : memref<96x512xbf16, #tpu.memory_space<vmem>>, vector<32x128xbf16>,
    %11 = arith.truncf %5 : vector<32x128xf32> to vector<32x128xbf16>
    %c32 = arith.constant 32 : index
    %c0_12 = arith.constant 0 : index
    %12 = vector.load %arg12[%c32, %c0_12] : memref<96x512xbf16, #tpu.memory_space<vmem>>, vector<32x128xbf16>
    tpu.vector_store %arg12[%c32, %c0_12], %11 {strides = array<i32>} : memref<96x512xbf16, #tpu.memory_space<vmem>>, vector<32x128xbf16>,
    %c127_i32 = arith.constant 127 : i32
    %13 = tpu.dynamic_rotate %5 by %c127_i32 dim 1 : vector<32x128xf32>, i32 -> vector<32x128xf32>
    %14 = vector.broadcast %3 : vector<1x128xf32> to vector<32x128xf32>
    %15 = arith.mulf %14, %13 : vector<32x128xf32>
    %16 = arith.truncf %15 : vector<32x128xf32> to vector<32x128xbf16>
    %c64 = arith.constant 64 : index
    %c0_13 = arith.constant 0 : index
    %17 = vector.load %arg12[%c64, %c0_13] : memref<96x512xbf16, #tpu.memory_space<vmem>>, vector<32x128xbf16>
    tpu.vector_store %arg12[%c64, %c0_13], %16 {strides = array<i32>} : memref<96x512xbf16, #tpu.memory_space<vmem>>, vector<32x128xbf16>,
    %c1 = arith.constant 1 : index
    %c0_14 = arith.constant 0 : index
    %c0_15 = arith.constant 0 : index
    %18 = vector.load %arg1[%c1, %c0_14, %c0_15] : memref<4x32x128xf32, #tpu.memory_space<vmem>>, vector<1x32x128xf32>
    %19 = vector.shape_cast %18 : vector<1x32x128xf32> to vector<32x128xf32>
    %c1_i32_16 = arith.constant 1 : i32
    %20 = tpu.dynamic_rotate %19 by %c1_i32_16 dim 1 : vector<32x128xf32>, i32 -> vector<32x128xf32>
    %21 = vector.broadcast %2 : vector<1x128xf32> to vector<32x128xf32>
    %22 = arith.mulf %21, %20 : vector<32x128xf32>
    %23 = arith.truncf %22 : vector<32x128xf32> to vector<32x128xbf16>
    %c0_17 = arith.constant 0 : index
    %c128 = arith.constant 128 : index
    %24 = vector.load %arg12[%c0_17, %c128] : memref<96x512xbf16, #tpu.memory_space<vmem>>, vector<32x128xbf16>
    tpu.vector_store %arg12[%c0_17, %c128], %23 {strides = array<i32>} : memref<96x512xbf16, #tpu.memory_space<vmem>>, vector<32x128xbf16>,
    %25 = arith.truncf %19 : vector<32x128xf32> to vector<32x128xbf16>
    %c32_18 = arith.constant 32 : index
    %c128_19 = arith.constant 128 : index
    %26 = vector.load %arg12[%c32_18, %c128_19] : memref<96x512xbf16, #tpu.memory_space<vmem>>, vector<32x128xbf16>
    tpu.vector_store %arg12[%c32_18, %c128_19], %25 {strides = array<i32>} : memref<96x512xbf16, #tpu.memory_space<vmem>>, vector<32x128xbf16>,
    %c127_i32_20 = arith.constant 127 : i32
    %27 = tpu.dynamic_rotate %19 by %c127_i32_20 dim 1 : vector<32x128xf32>, i32 -> vector<32x128xf32>
    %28 = vector.broadcast %3 : vector<1x128xf32> to vector<32x128xf32>
    %29 = arith.mulf %28, %27 : vector<32x128xf32>
    %30 = arith.truncf %29 : vector<32x128xf32> to vector<32x128xbf16>
    %c64_21 = arith.constant 64 : index
    %c128_22 = arith.constant 128 : index
    %31 = vector.load %arg12[%c64_21, %c128_22] : memref<96x512xbf16, #tpu.memory_space<vmem>>, vector<32x128xbf16>
    tpu.vector_store %arg12[%c64_21, %c128_22], %30 {strides = array<i32>} : memref<96x512xbf16, #tpu.memory_space<vmem>>, vector<32x128xbf16>,
    %c2 = arith.constant 2 : index
    %c0_23 = arith.constant 0 : index
    %c0_24 = arith.constant 0 : index
    %32 = vector.load %arg1[%c2, %c0_23, %c0_24] : memref<4x32x128xf32, #tpu.memory_space<vmem>>, vector<1x32x128xf32>
    %33 = vector.shape_cast %32 : vector<1x32x128xf32> to vector<32x128xf32>
    %c1_i32_25 = arith.constant 1 : i32
    %34 = tpu.dynamic_rotate %33 by %c1_i32_25 dim 1 : vector<32x128xf32>, i32 -> vector<32x128xf32>
    %35 = vector.broadcast %2 : vector<1x128xf32> to vector<32x128xf32>
    %36 = arith.mulf %35, %34 : vector<32x128xf32>
    %37 = arith.truncf %36 : vector<32x128xf32> to vector<32x128xbf16>
    %c0_26 = arith.constant 0 : index
    %c256 = arith.constant 256 : index
    %38 = vector.load %arg12[%c0_26, %c256] : memref<96x512xbf16, #tpu.memory_space<vmem>>, vector<32x128xbf16>
    tpu.vector_store %arg12[%c0_26, %c256], %37 {strides = array<i32>} : memref<96x512xbf16, #tpu.memory_space<vmem>>, vector<32x128xbf16>,
    %39 = arith.truncf %33 : vector<32x128xf32> to vector<32x128xbf16>
    %c32_27 = arith.constant 32 : index
    %c256_28 = arith.constant 256 : index
    %40 = vector.load %arg12[%c32_27, %c256_28] : memref<96x512xbf16, #tpu.memory_space<vmem>>, vector<32x128xbf16>
    tpu.vector_store %arg12[%c32_27, %c256_28], %39 {strides = array<i32>} : memref<96x512xbf16, #tpu.memory_space<vmem>>, vector<32x128xbf16>,
    %c127_i32_29 = arith.constant 127 : i32
    %41 = tpu.dynamic_rotate %33 by %c127_i32_29 dim 1 : vector<32x128xf32>, i32 -> vector<32x128xf32>
    %42 = vector.broadcast %3 : vector<1x128xf32> to vector<32x128xf32>
    %43 = arith.mulf %42, %41 : vector<32x128xf32>
    %44 = arith.truncf %43 : vector<32x128xf32> to vector<32x128xbf16>
    %c64_30 = arith.constant 64 : index
    %c256_31 = arith.constant 256 : index
    %45 = vector.load %arg12[%c64_30, %c256_31] : memref<96x512xbf16, #tpu.memory_space<vmem>>, vector<32x128xbf16>
    tpu.vector_store %arg12[%c64_30, %c256_31], %44 {strides = array<i32>} : memref<96x512xbf16, #tpu.memory_space<vmem>>, vector<32x128xbf16>,
    %c3 = arith.constant 3 : index
    %c0_32 = arith.constant 0 : index
    %c0_33 = arith.constant 0 : index
    %46 = vector.load %arg1[%c3, %c0_32, %c0_33] : memref<4x32x128xf32, #tpu.memory_space<vmem>>, vector<1x32x128xf32>
    %47 = vector.shape_cast %46 : vector<1x32x128xf32> to vector<32x128xf32>
    %c1_i32_34 = arith.constant 1 : i32
    %48 = tpu.dynamic_rotate %47 by %c1_i32_34 dim 1 : vector<32x128xf32>, i32 -> vector<32x128xf32>
    %49 = vector.broadcast %2 : vector<1x128xf32> to vector<32x128xf32>
    %50 = arith.mulf %49, %48 : vector<32x128xf32>
    %51 = arith.truncf %50 : vector<32x128xf32> to vector<32x128xbf16>
    %c0_35 = arith.constant 0 : index
    %c384 = arith.constant 384 : index
    %52 = vector.load %arg12[%c0_35, %c384] : memref<96x512xbf16, #tpu.memory_space<vmem>>, vector<32x128xbf16>
    tpu.vector_store %arg12[%c0_35, %c384], %51 {strides = array<i32>} : memref<96x512xbf16, #tpu.memory_space<vmem>>, vector<32x128xbf16>,
    %53 = arith.truncf %47 : vector<32x128xf32> to vector<32x128xbf16>
    %c32_36 = arith.constant 32 : index
    %c384_37 = arith.constant 384 : index
    %54 = vector.load %arg12[%c32_36, %c384_37] : memref<96x512xbf16, #tpu.memory_space<vmem>>, vector<32x128xbf16>
    tpu.vector_store %arg12[%c32_36, %c384_37], %53 {strides = array<i32>} : memref<96x512xbf16, #tpu.memory_space<vmem>>, vector<32x128xbf16>,
    %c127_i32_38 = arith.constant 127 : i32
    %55 = tpu.dynamic_rotate %47 by %c127_i32_38 dim 1 : vector<32x128xf32>, i32 -> vector<32x128xf32>
    %56 = vector.broadcast %3 : vector<1x128xf32> to vector<32x128xf32>
    %57 = arith.mulf %56, %55 : vector<32x128xf32>
    %58 = arith.truncf %57 : vector<32x128xf32> to vector<32x128xbf16>
    %c64_39 = arith.constant 64 : index
    %c384_40 = arith.constant 384 : index
    %59 = vector.load %arg12[%c64_39, %c384_40] : memref<96x512xbf16, #tpu.memory_space<vmem>>, vector<32x128xbf16>
    tpu.vector_store %arg12[%c64_39, %c384_40], %58 {strides = array<i32>} : memref<96x512xbf16, #tpu.memory_space<vmem>>, vector<32x128xbf16>,
    %c0_41 = arith.constant 0 : index
    %c0_42 = arith.constant 0 : index
    %60 = vector.load %arg2[%c0_41, %c0_42] : memref<32x96xbf16, #tpu.memory_space<vmem>>, vector<32x96xbf16>
    %c0_43 = arith.constant 0 : index
    %c0_44 = arith.constant 0 : index
    %61 = vector.load %arg12[%c0_43, %c0_44] : memref<96x512xbf16, #tpu.memory_space<vmem>>, vector<96x512xbf16>
    %cst = arith.constant dense<0.000000e+00> : vector<32x512xf32>
    %62 = tpu.matmul %60, %61, %cst {dimension_numbers = #tpu.dot_dimension_numbers<[1], [0], [0], [1], [0, 0, 1, 1], [], []>} : vector<32x96xbf16>, vector<96x512xbf16>, vector<32x512xf32> -> vector<32x512xf32>
    %c0_45 = arith.constant 0 : index
    %c0_46 = arith.constant 0 : index
    %63 = vector.load %arg3[%c0_45, %c0_46] : memref<32x1xf32, #tpu.memory_space<vmem>>, vector<32x1xf32>
    %64 = vector.broadcast %63 : vector<32x1xf32> to vector<32x512xf32>
    %65 = arith.addf %62, %64 : vector<32x512xf32>
    %cst_47 = arith.constant 0.000000e+00 : f32
    %66 = vector.broadcast %cst_47 : f32 to vector<32x512xf32>
    %67 = arith.maximumf %65, %66 : vector<32x512xf32>
    %c1_i32_48 = arith.constant 1 : i32
    %68 = tpu.dynamic_rotate %67 by %c1_i32_48 dim 1 : vector<32x512xf32>, i32 -> vector<32x512xf32>
    %69 = vector.broadcast %0 : vector<1x512xf32> to vector<32x512xf32>
    %70 = arith.mulf %69, %68 : vector<32x512xf32>
    %71 = arith.truncf %70 : vector<32x512xf32> to vector<32x512xbf16>
    %c0_49 = arith.constant 0 : index
    %c0_50 = arith.constant 0 : index
    %72 = vector.load %arg12[%c0_49, %c0_50] : memref<96x512xbf16, #tpu.memory_space<vmem>>, vector<32x512xbf16>
    tpu.vector_store %arg12[%c0_49, %c0_50], %71 {strides = array<i32>} : memref<96x512xbf16, #tpu.memory_space<vmem>>, vector<32x512xbf16>,
    %73 = arith.truncf %67 : vector<32x512xf32> to vector<32x512xbf16>
    %c32_51 = arith.constant 32 : index
    %c0_52 = arith.constant 0 : index
    %74 = vector.load %arg12[%c32_51, %c0_52] : memref<96x512xbf16, #tpu.memory_space<vmem>>, vector<32x512xbf16>
    tpu.vector_store %arg12[%c32_51, %c0_52], %73 {strides = array<i32>} : memref<96x512xbf16, #tpu.memory_space<vmem>>, vector<32x512xbf16>,
    %c511_i32 = arith.constant 511 : i32
    %75 = tpu.dynamic_rotate %67 by %c511_i32 dim 1 : vector<32x512xf32>, i32 -> vector<32x512xf32>
    %76 = vector.broadcast %1 : vector<1x512xf32> to vector<32x512xf32>
    %77 = arith.mulf %76, %75 : vector<32x512xf32>
    %78 = arith.truncf %77 : vector<32x512xf32> to vector<32x512xbf16>
    %c64_53 = arith.constant 64 : index
    %c0_54 = arith.constant 0 : index
    %79 = vector.load %arg12[%c64_53, %c0_54] : memref<96x512xbf16, #tpu.memory_space<vmem>>, vector<32x512xbf16>
    tpu.vector_store %arg12[%c64_53, %c0_54], %78 {strides = array<i32>} : memref<96x512xbf16, #tpu.memory_space<vmem>>, vector<32x512xbf16>,
    %c0_55 = arith.constant 0 : index
    %c0_56 = arith.constant 0 : index
    %80 = vector.load %arg4[%c0_55, %c0_56] : memref<32x96xbf16, #tpu.memory_space<vmem>>, vector<32x96xbf16>
    %c0_57 = arith.constant 0 : index
    %c0_58 = arith.constant 0 : index
    %81 = vector.load %arg12[%c0_57, %c0_58] : memref<96x512xbf16, #tpu.memory_space<vmem>>, vector<96x512xbf16>
    %cst_59 = arith.constant dense<0.000000e+00> : vector<32x512xf32>
    %82 = tpu.matmul %80, %81, %cst_59 {dimension_numbers = #tpu.dot_dimension_numbers<[1], [0], [0], [1], [0, 0, 1, 1], [], []>} : vector<32x96xbf16>, vector<96x512xbf16>, vector<32x512xf32> -> vector<32x512xf32>
    %c0_60 = arith.constant 0 : index
    %c0_61 = arith.constant 0 : index
    %83 = vector.load %arg5[%c0_60, %c0_61] : memref<32x1xf32, #tpu.memory_space<vmem>>, vector<32x1xf32>
    %84 = vector.broadcast %83 : vector<32x1xf32> to vector<32x512xf32>
    %85 = arith.addf %82, %84 : vector<32x512xf32>
    %c0_62 = arith.constant 0 : index
    %c0_63 = arith.constant 0 : index
    %86 = vector.load %arg8[%c0_62, %c0_63] : memref<512x4xf32, #tpu.memory_space<vmem>>, vector<512x4xf32>
    %cst_64 = arith.constant dense<0.000000e+00> : vector<32x4xf32>
    %87 = tpu.matmul %85, %86, %cst_64 {dimension_numbers = #tpu.dot_dimension_numbers<[1], [0], [0], [1], [0, 0, 1, 1], [], []>} : vector<32x512xf32>, vector<512x4xf32>, vector<32x4xf32> -> vector<32x4xf32>
    %c0_65 = arith.constant 0 : index
    %c0_66 = arith.constant 0 : index
    %88 = vector.load %arg6[%c0_65, %c0_66] : memref<2x32xf32, #tpu.memory_space<vmem>>, vector<2x32xf32>
    %cst_67 = arith.constant dense<0.000000e+00> : vector<2x4xf32>
    %89 = tpu.matmul %88, %87, %cst_67 {dimension_numbers = #tpu.dot_dimension_numbers<[1], [0], [0], [1], [0, 0, 1, 1], [], []>} : vector<2x32xf32>, vector<32x4xf32>, vector<2x4xf32> -> vector<2x4xf32>
    %cst_68 = arith.constant 0.000000e+00 : f32
    %90 = vector.broadcast %cst_68 : f32 to vector<2x4xf32>
    %91 = arith.maximumf %89, %90 : vector<2x4xf32>
    %c0_69 = arith.constant 0 : index
    %c0_70 = arith.constant 0 : index
    %92 = vector.load %arg7[%c0_69, %c0_70] : memref<32x2xf32, #tpu.memory_space<vmem>>, vector<32x2xf32>
    %cst_71 = arith.constant dense<0.000000e+00> : vector<32x4xf32>
    %93 = tpu.matmul %92, %91, %cst_71 {dimension_numbers = #tpu.dot_dimension_numbers<[1], [0], [0], [1], [0, 0, 1, 1], [], []>} : vector<32x2xf32>, vector<2x4xf32>, vector<32x4xf32> -> vector<32x4xf32>
    %94 = arith.negf %93 : vector<32x4xf32>
    %95 = math.exp %94 : vector<32x4xf32>
    %cst_72 = arith.constant 1.000000e+00 : f32
    %96 = vector.broadcast %cst_72 : f32 to vector<32x4xf32>
    %97 = arith.addf %96, %95 : vector<32x4xf32>
    %98 = arith.divf %96, %97 : vector<32x4xf32>
    %99 = vector.extract_strided_slice %85 {offsets = [0, 0], sizes = [32, 128], strides = [1, 1]} : vector<32x512xf32> to vector<32x128xf32>
    %100 = vector.extract_strided_slice %98 {offsets = [0, 0], sizes = [32, 1], strides = [1, 1]} : vector<32x4xf32> to vector<32x1xf32>
    %101 = vector.broadcast %100 : vector<32x1xf32> to vector<32x128xf32>
    %102 = arith.mulf %99, %101 : vector<32x128xf32>
    %c0_73 = arith.constant 0 : index
    %c0_74 = arith.constant 0 : index
    %c0_75 = arith.constant 0 : index
    %103 = vector.load %arg1[%c0_73, %c0_74, %c0_75] : memref<4x32x128xf32, #tpu.memory_space<vmem>>, vector<1x32x128xf32>
    %104 = vector.shape_cast %103 : vector<1x32x128xf32> to vector<32x128xf32>
    %105 = arith.addf %102, %104 : vector<32x128xf32>
    %cst_76 = arith.constant 0.000000e+00 : f32
    %106 = vector.broadcast %cst_76 : f32 to vector<32x128xf32>
    %107 = arith.maximumf %105, %106 : vector<32x128xf32>
    %c0_77 = arith.constant 0 : index
    %c0_78 = arith.constant 0 : index
    %c0_79 = arith.constant 0 : index
    %108 = vector.load %arg11[%c0_77, %c0_78, %c0_79] : memref<4x32x128xf32, #tpu.memory_space<vmem>>, vector<1x32x128xf32>
    %109 = vector.shape_cast %108 : vector<1x32x128xf32> to vector<32x128xf32>
    %110 = vector.shape_cast %107 : vector<32x128xf32> to vector<1x32x128xf32>
    tpu.vector_store %arg11[%c0_77, %c0_78, %c0_79], %110 {strides = array<i32>} : memref<4x32x128xf32, #tpu.memory_space<vmem>>, vector<1x32x128xf32>,
    %111 = vector.extract_strided_slice %85 {offsets = [0, 128], sizes = [32, 128], strides = [1, 1]} : vector<32x512xf32> to vector<32x128xf32>
    %112 = vector.extract_strided_slice %98 {offsets = [0, 1], sizes = [32, 1], strides = [1, 1]} : vector<32x4xf32> to vector<32x1xf32>
    %113 = vector.broadcast %112 : vector<32x1xf32> to vector<32x128xf32>
    %114 = arith.mulf %111, %113 : vector<32x128xf32>
    %c1_80 = arith.constant 1 : index
    %c0_81 = arith.constant 0 : index
    %c0_82 = arith.constant 0 : index
    %115 = vector.load %arg1[%c1_80, %c0_81, %c0_82] : memref<4x32x128xf32, #tpu.memory_space<vmem>>, vector<1x32x128xf32>
    %116 = vector.shape_cast %115 : vector<1x32x128xf32> to vector<32x128xf32>
    %117 = arith.addf %114, %116 : vector<32x128xf32>
    %cst_83 = arith.constant 0.000000e+00 : f32
    %118 = vector.broadcast %cst_83 : f32 to vector<32x128xf32>
    %119 = arith.maximumf %117, %118 : vector<32x128xf32>
    %c1_84 = arith.constant 1 : index
    %c0_85 = arith.constant 0 : index
    %c0_86 = arith.constant 0 : index
    %120 = vector.load %arg11[%c1_84, %c0_85, %c0_86] : memref<4x32x128xf32, #tpu.memory_space<vmem>>, vector<1x32x128xf32>
    %121 = vector.shape_cast %120 : vector<1x32x128xf32> to vector<32x128xf32>
    %122 = vector.shape_cast %119 : vector<32x128xf32> to vector<1x32x128xf32>
    tpu.vector_store %arg11[%c1_84, %c0_85, %c0_86], %122 {strides = array<i32>} : memref<4x32x128xf32, #tpu.memory_space<vmem>>, vector<1x32x128xf32>,
    %123 = vector.extract_strided_slice %85 {offsets = [0, 256], sizes = [32, 128], strides = [1, 1]} : vector<32x512xf32> to vector<32x128xf32>
    %124 = vector.extract_strided_slice %98 {offsets = [0, 2], sizes = [32, 1], strides = [1, 1]} : vector<32x4xf32> to vector<32x1xf32>
    %125 = vector.broadcast %124 : vector<32x1xf32> to vector<32x128xf32>
    %126 = arith.mulf %123, %125 : vector<32x128xf32>
    %c2_87 = arith.constant 2 : index
    %c0_88 = arith.constant 0 : index
    %c0_89 = arith.constant 0 : index
    %127 = vector.load %arg1[%c2_87, %c0_88, %c0_89] : memref<4x32x128xf32, #tpu.memory_space<vmem>>, vector<1x32x128xf32>
    %128 = vector.shape_cast %127 : vector<1x32x128xf32> to vector<32x128xf32>
    %129 = arith.addf %126, %128 : vector<32x128xf32>
    %cst_90 = arith.constant 0.000000e+00 : f32
    %130 = vector.broadcast %cst_90 : f32 to vector<32x128xf32>
    %131 = arith.maximumf %129, %130 : vector<32x128xf32>
    %c2_91 = arith.constant 2 : index
    %c0_92 = arith.constant 0 : index
    %c0_93 = arith.constant 0 : index
    %132 = vector.load %arg11[%c2_91, %c0_92, %c0_93] : memref<4x32x128xf32, #tpu.memory_space<vmem>>, vector<1x32x128xf32>
    %133 = vector.shape_cast %132 : vector<1x32x128xf32> to vector<32x128xf32>
    %134 = vector.shape_cast %131 : vector<32x128xf32> to vector<1x32x128xf32>
    tpu.vector_store %arg11[%c2_91, %c0_92, %c0_93], %134 {strides = array<i32>} : memref<4x32x128xf32, #tpu.memory_space<vmem>>, vector<1x32x128xf32>,
    %135 = vector.extract_strided_slice %85 {offsets = [0, 384], sizes = [32, 128], strides = [1, 1]} : vector<32x512xf32> to vector<32x128xf32>
    %136 = vector.extract_strided_slice %98 {offsets = [0, 3], sizes = [32, 1], strides = [1, 1]} : vector<32x4xf32> to vector<32x1xf32>
    %137 = vector.broadcast %136 : vector<32x1xf32> to vector<32x128xf32>
    %138 = arith.mulf %135, %137 : vector<32x128xf32>
    %c3_94 = arith.constant 3 : index
    %c0_95 = arith.constant 0 : index
    %c0_96 = arith.constant 0 : index
    %139 = vector.load %arg1[%c3_94, %c0_95, %c0_96] : memref<4x32x128xf32, #tpu.memory_space<vmem>>, vector<1x32x128xf32>
    %140 = vector.shape_cast %139 : vector<1x32x128xf32> to vector<32x128xf32>
    %141 = arith.addf %138, %140 : vector<32x128xf32>
    %cst_97 = arith.constant 0.000000e+00 : f32
    %142 = vector.broadcast %cst_97 : f32 to vector<32x128xf32>
    %143 = arith.maximumf %141, %142 : vector<32x128xf32>
    %c3_98 = arith.constant 3 : index
    %c0_99 = arith.constant 0 : index
    %c0_100 = arith.constant 0 : index
    %144 = vector.load %arg11[%c3_98, %c0_99, %c0_100] : memref<4x32x128xf32, #tpu.memory_space<vmem>>, vector<1x32x128xf32>
    %145 = vector.shape_cast %144 : vector<1x32x128xf32> to vector<32x128xf32>
    %146 = vector.shape_cast %143 : vector<32x128xf32> to vector<1x32x128xf32>
    tpu.vector_store %arg11[%c3_98, %c0_99, %c0_100], %146 {strides = array<i32>} : memref<4x32x128xf32, #tpu.memory_space<vmem>>, vector<1x32x128xf32>,
    return
  }
  func.func @transform_0(%arg0: i32) -> (i32, i32, i32) {
    %c0_i32 = arith.constant 0 : i32
    %c0_i32_0 = arith.constant 0 : i32
    %c0_i32_1 = arith.constant 0 : i32
    return %arg0, %c0_i32, %c0_i32_0 : i32, i32, i32
  }
  func.func @transform_1(%arg0: i32) -> (i32, i32) {
    %c0_i32 = arith.constant 0 : i32
    %c0_i32_0 = arith.constant 0 : i32
    %c0_i32_1 = arith.constant 0 : i32
    return %c0_i32, %c0_i32_0 : i32, i32
  }
  func.func @transform_2(%arg0: i32) -> (i32, i32) {
    %c0_i32 = arith.constant 0 : i32
    %c0_i32_0 = arith.constant 0 : i32
    %c0_i32_1 = arith.constant 0 : i32
    return %c0_i32, %c0_i32_0 : i32, i32
  }
  func.func @transform_3(%arg0: i32) -> (i32, i32) {
    %c0_i32 = arith.constant 0 : i32
    %c0_i32_0 = arith.constant 0 : i32
    %c0_i32_1 = arith.constant 0 : i32
    return %c0_i32, %c0_i32_0 : i32, i32
  }
  func.func @transform_4(%arg0: i32) -> (i32, i32) {
    %c0_i32 = arith.constant 0 : i32
    %c0_i32_0 = arith.constant 0 : i32
    %c0_i32_1 = arith.constant 0 : i32
    return %c0_i32, %c0_i32_0 : i32, i32
  }
  func.func @transform_5(%arg0: i32) -> (i32, i32) {
    %c0_i32 = arith.constant 0 : i32
    %c0_i32_0 = arith.constant 0 : i32
    %c0_i32_1 = arith.constant 0 : i32
    return %c0_i32, %c0_i32_0 : i32, i32
  }
  func.func @transform_6(%arg0: i32) -> (i32, i32) {
    %c0_i32 = arith.constant 0 : i32
    %c0_i32_0 = arith.constant 0 : i32
    %c0_i32_1 = arith.constant 0 : i32
    return %c0_i32, %c0_i32_0 : i32, i32
  }
  func.func @transform_7(%arg0: i32) -> (i32, i32) {
    %c0_i32 = arith.constant 0 : i32
    %c0_i32_0 = arith.constant 0 : i32
    %c0_i32_1 = arith.constant 0 : i32
    return %c0_i32, %c0_i32_0 : i32, i32
  }
  func.func @transform_8(%arg0: i32) -> (i32, i32) {
    %c0_i32 = arith.constant 0 : i32
    %c0_i32_0 = arith.constant 0 : i32
    %c0_i32_1 = arith.constant 0 : i32
    return %c0_i32, %c0_i32_0 : i32, i32
  }
  func.func @transform_9(%arg0: i32) -> (i32, i32) {
    %c0_i32 = arith.constant 0 : i32
    %c0_i32_0 = arith.constant 0 : i32
    %c0_i32_1 = arith.constant 0 : i32
    return %c0_i32, %c0_i32_0 : i32, i32
  }
  func.func @transform_10(%arg0: i32) -> (i32, i32, i32) {
    %c0_i32 = arith.constant 0 : i32
    %c0_i32_0 = arith.constant 0 : i32
    %c0_i32_1 = arith.constant 0 : i32
    return %arg0, %c0_i32, %c0_i32_0 : i32, i32, i32
  }
}

</mosaic_0001>

<llo_original>
// kernel: _forward_impl.1
$region0: #{_forward_impl.1}
  #allocation0 [shape = 'u32[]', space=smem, size = 0x4, offset = 0x4, fixed_abs, tag = 'smem constant byte address 0x4 - core index']
  #allocation1 [shape = 'u32[144,128]{1,0:T(1,128)}', space=vmem, size = 0x12000, scoped, tag = 'internal scratch']
  #allocation2 [shape = 'bf16[96,512]{1,0:T(16,128)(2,1)}', space=vmem, size = 0x18000, scoped, tag = 'scratch operand']
  %s0 = inlined_call_operand.vmem [shape: f32[8,32,128], index: 0, kind: input, shape index: {}]
  %s1 = inlined_call_operand.vmem [shape: bf16[32,96], index: 1, kind: input, shape index: {}]
  %s2 = inlined_call_operand.vmem [shape: f32[32,1], index: 2, kind: input, shape index: {}]
  %s3 = inlined_call_operand.vmem [shape: bf16[32,96], index: 3, kind: input, shape index: {}]
  %s4 = inlined_call_operand.vmem [shape: f32[32,1], index: 4, kind: input, shape index: {}]
  %s5 = inlined_call_operand.vmem [shape: f32[2,32], index: 5, kind: input, shape index: {}]
  %s6 = inlined_call_operand.vmem [shape: f32[32,2], index: 6, kind: input, shape index: {}]
  %s7 = inlined_call_operand.vmem [shape: f32[512,4], index: 7, kind: input, shape index: {}]
  %s8 = inlined_call_operand.vmem [shape: f32[1,512], index: 8, kind: input, shape index: {}]
  %s9 = inlined_call_operand.vmem [shape: f32[1,512], index: 9, kind: input, shape index: {}]
  %s10 = inlined_call_operand.vmem [shape: f32[8,32,128], index: 10, kind: output, shape index: {}]
  %s11 = sld [smem:[#allocation0]]
  $region73: #{_forward_impl.1} parent=0
    _
  %s13 = ssub.s32 1, %s11
  %s14 = scalar_select 0, %s13, %s11
  loop: start=0, step=1, limit=4
  $region2: #{_forward_impl.1} parent=0 // loop_pre_header
    _
  $region3: #{_forward_impl.1} parent=0 // loop_header
    %s16 = sphi 0, %s20
    %p17 = scmp.ge.s32.totalorder %s16, 4
    %s26 = sphi 0, %s28
    %s29 = sphi 0, %s26
    %s30 = sphi 0, %s29
    %s46 = sphi 0, %s30
    %s50 = sphi 0, %s50
    %s52 = sphi 0, %s50
    %s53 = sphi 0, %s52
    %s67 = sphi 0, %s53
    %s71 = sphi 0, %s71
    %s73 = sphi 0, %s71
    %s74 = sphi 0, %s73
    %s88 = sphi 0, %s74
    %s92 = sphi 0, %s92
    %s94 = sphi 0, %s92
    %s95 = sphi 0, %s94
    %s109 = sphi 0, %s95
    %s113 = sphi 0, %s113
    %s115 = sphi 0, %s113
    %s116 = sphi 0, %s115
    %s130 = sphi 0, %s116
    %s134 = sphi 0, %s134
    %s136 = sphi 0, %s134
    %s137 = sphi 0, %s136
    %s151 = sphi 0, %s137
    %s155 = sphi 0, %s155
    %s157 = sphi 0, %s155
    %s158 = sphi 0, %s157
    %s172 = sphi 0, %s158
    %s176 = sphi 0, %s176
    %s178 = sphi 0, %s176
    %s179 = sphi 0, %s178
    %s193 = sphi 0, %s179
    %s197 = sphi 0, %s197
    %s199 = sphi 0, %s197
    %s200 = sphi 0, %s199
    %s214 = sphi 0, %s200
    %s218 = sphi 0, %s218
    %s220 = sphi 0, %s218
    %s221 = sphi 0, %s220
    %s235 = sphi 0, %s221
    %s241 = sphi 0, %s243
    %s244 = sphi 0, %s241
    %s245 = sphi 0, %s244
    %s261 = sphi 0, %s245
  $region4: #{_forward_impl.1} parent=0 // loop_header_branch
    %19 = sbr.rel (%p17) target = $region8
  $region5: #{_forward_impl.1} parent=0 // loop_body
    %s21 = ssub.s32 %s16, 1
    %s22 = ssub.s32 %s16, 2
    %s23 = sadd.s32 %s16, 1
    %s24 = ssub.s32 %s16, %s23
    %p25 = scmp.eq.s32.totalorder %s24, 0
    %s27 = sadd.s32 %s26, 1
    %s28 = scalar_select %p25, %s26, %s27
    %p31 = pneg %p25
    %p32 = scmp.eq.s32.totalorder %s16, 1
    %p33 = por %p31, %p32
    %p34 = scmp.ne.s32.totalorder %s26, %s29
    %p35 = scmp.eq.s32.totalorder %s16, 0
    %p36 = por %p34, %p35
    %p37 = scmp.ne.s32.totalorder %s26, %s29
    %p38 = scmp.eq.s32.totalorder %s21, 1
    %p39 = por %p37, %p38
    %p40 = scmp.ne.s32.totalorder %s29, %s30
    %p41 = scmp.eq.s32.totalorder %s21, 0
    %p42 = por %p40, %p41
    %p43 = scmp.ne.s32.totalorder %s29, %s30
    %p44 = scmp.eq.s32.totalorder %s22, 1
    %p45 = por %p43, %p44
    %p47 = scmp.ne.s32.totalorder %s30, %s46
    %p48 = scmp.eq.s32.totalorder %s22, 0
    %p49 = por %p47, %p48
    %s51 = sadd.s32 %s50, 1
    %p54 = scmp.eq.s32.totalorder %s16, 1
    %p55 = scmp.ne.s32.totalorder %s50, %s52
    %p56 = scmp.eq.s32.totalorder %s16, 0
    %p57 = por %p55, %p56
    %p58 = scmp.ne.s32.totalorder %s50, %s52
    %p59 = scmp.eq.s32.totalorder %s21, 1
    %p60 = por %p58, %p59
    %p61 = scmp.ne.s32.totalorder %s52, %s53
    %p62 = scmp.eq.s32.totalorder %s21, 0
    %p63 = por %p61, %p62
    %p64 = scmp.ne.s32.totalorder %s52, %s53
    %p65 = scmp.eq.s32.totalorder %s22, 1
    %p66 = por %p64, %p65
    %p68 = scmp.ne.s32.totalorder %s53, %s67
    %p69 = scmp.eq.s32.totalorder %s22, 0
    %p70 = por %p68, %p69
    %s72 = sadd.s32 %s71, 1
    %p75 = scmp.eq.s32.totalorder %s16, 1
    %p76 = scmp.ne.s32.totalorder %s71, %s73
    %p77 = scmp.eq.s32.totalorder %s16, 0
    %p78 = por %p76, %p77
    %p79 = scmp.ne.s32.totalorder %s71, %s73
    %p80 = scmp.eq.s32.totalorder %s21, 1
    %p81 = por %p79, %p80
    %p82 = scmp.ne.s32.totalorder %s73, %s74
    %p83 = scmp.eq.s32.totalorder %s21, 0
    %p84 = por %p82, %p83
    %p85 = scmp.ne.s32.totalorder %s73, %s74
    %p86 = scmp.eq.s32.totalorder %s22, 1
    %p87 = por %p85, %p86
    %p89 = scmp.ne.s32.totalorder %s74, %s88
    %p90 = scmp.eq.s32.totalorder %s22, 0
    %p91 = por %p89, %p90
    %s93 = sadd.s32 %s92, 1
    %p96 = scmp.eq.s32.totalorder %s16, 1
    %p97 = scmp.ne.s32.totalorder %s92, %s94
    %p98 = scmp.eq.s32.totalorder %s16, 0
    %p99 = por %p97, %p98
    %p100 = scmp.ne.s32.totalorder %s92, %s94
    %p101 = scmp.eq.s32.totalorder %s21, 1
    %p102 = por %p100, %p101
    %p103 = scmp.ne.s32.totalorder %s94, %s95
    %p104 = scmp.eq.s32.totalorder %s21, 0
    %p105 = por %p103, %p104
    %p106 = scmp.ne.s32.totalorder %s94, %s95
    %p107 = scmp.eq.s32.totalorder %s22, 1
    %p108 = por %p106, %p107
    %p110 = scmp.ne.s32.totalorder %s95, %s109
    %p111 = scmp.eq.s32.totalorder %s22, 0
    %p112 = por %p110, %p111
    %s114 = sadd.s32 %s113, 1
    %p117 = scmp.eq.s32.totalorder %s16, 1
    %p118 = scmp.ne.s32.totalorder %s113, %s115
    %p119 = scmp.eq.s32.totalorder %s16, 0
    %p120 = por %p118, %p119
    %p121 = scmp.ne.s32.totalorder %s113, %s115
    %p122 = scmp.eq.s32.totalorder %s21, 1
    %p123 = por %p121, %p122
    %p124 = scmp.ne.s32.totalorder %s115, %s116
    %p125 = scmp.eq.s32.totalorder %s21, 0
    %p126 = por %p124, %p125
    %p127 = scmp.ne.s32.totalorder %s115, %s116
    %p128 = scmp.eq.s32.totalorder %s22, 1
    %p129 = por %p127, %p128
    %p131 = scmp.ne.s32.totalorder %s116, %s130
    %p132 = scmp.eq.s32.totalorder %s22, 0
    %p133 = por %p131, %p132
    %s135 = sadd.s32 %s134, 1
    %p138 = scmp.eq.s32.totalorder %s16, 1
    %p139 = scmp.ne.s32.totalorder %s134, %s136
    %p140 = scmp.eq.s32.totalorder %s16, 0
    %p141 = por %p139, %p140
    %p142 = scmp.ne.s32.totalorder %s134, %s136
    %p143 = scmp.eq.s32.totalorder %s21, 1
    %p144 = por %p142, %p143
    %p145 = scmp.ne.s32.totalorder %s136, %s137
    %p146 = scmp.eq.s32.totalorder %s21, 0
    %p147 = por %p145, %p146
    %p148 = scmp.ne.s32.totalorder %s136, %s137
    %p149 = scmp.eq.s32.totalorder %s22, 1
    %p150 = por %p148, %p149
    %p152 = scmp.ne.s32.totalorder %s137, %s151
    %p153 = scmp.eq.s32.totalorder %s22, 0
    %p154 = por %p152, %p153
    %s156 = sadd.s32 %s155, 1
    %p159 = scmp.eq.s32.totalorder %s16, 1
    %p160 = scmp.ne.s32.totalorder %s155, %s157
    %p161 = scmp.eq.s32.totalorder %s16, 0
    %p162 = por %p160, %p161
    %p163 = scmp.ne.s32.totalorder %s155, %s157
    %p164 = scmp.eq.s32.totalorder %s21, 1
    %p165 = por %p163, %p164
    %p166 = scmp.ne.s32.totalorder %s157, %s158
    %p167 = scmp.eq.s32.totalorder %s21, 0
    %p168 = por %p166, %p167
    %p169 = scmp.ne.s32.totalorder %s157, %s158
    %p170 = scmp.eq.s32.totalorder %s22, 1
    %p171 = por %p169, %p170
    %p173 = scmp.ne.s32.totalorder %s158, %s172
    %p174 = scmp.eq.s32.totalorder %s22, 0
    %p175 = por %p173, %p174
    %s177 = sadd.s32 %s176, 1
    %p180 = scmp.eq.s32.totalorder %s16, 1
    %p181 = scmp.ne.s32.totalorder %s176, %s178
    %p182 = scmp.eq.s32.totalorder %s16, 0
    %p183 = por %p181, %p182
    %p184 = scmp.ne.s32.totalorder %s176, %s178
    %p185 = scmp.eq.s32.totalorder %s21, 1
    %p186 = por %p184, %p185
    %p187 = scmp.ne.s32.totalorder %s178, %s179
    %p188 = scmp.eq.s32.totalorder %s21, 0
    %p189 = por %p187, %p188
    %p190 = scmp.ne.s32.totalorder %s178, %s179
    %p191 = scmp.eq.s32.totalorder %s22, 1
    %p192 = por %p190, %p191
    %p194 = scmp.ne.s32.totalorder %s179, %s193
    %p195 = scmp.eq.s32.totalorder %s22, 0
    %p196 = por %p194, %p195
    %s198 = sadd.s32 %s197, 1
    %p201 = scmp.eq.s32.totalorder %s16, 1
    %p202 = scmp.ne.s32.totalorder %s197, %s199
    %p203 = scmp.eq.s32.totalorder %s16, 0
    %p204 = por %p202, %p203
    %p205 = scmp.ne.s32.totalorder %s197, %s199
    %p206 = scmp.eq.s32.totalorder %s21, 1
    %p207 = por %p205, %p206
    %p208 = scmp.ne.s32.totalorder %s199, %s200
    %p209 = scmp.eq.s32.totalorder %s21, 0
    %p210 = por %p208, %p209
    %p211 = scmp.ne.s32.totalorder %s199, %s200
    %p212 = scmp.eq.s32.totalorder %s22, 1
    %p213 = por %p211, %p212
    %p215 = scmp.ne.s32.totalorder %s200, %s214
    %p216 = scmp.eq.s32.totalorder %s22, 0
    %p217 = por %p215, %p216
    %s219 = sadd.s32 %s218, 1
    %p222 = scmp.eq.s32.totalorder %s16, 1
    %p223 = scmp.ne.s32.totalorder %s218, %s220
    %p224 = scmp.eq.s32.totalorder %s16, 0
    %p225 = por %p223, %p224
    %p226 = scmp.ne.s32.totalorder %s218, %s220
    %p227 = scmp.eq.s32.totalorder %s21, 1
    %p228 = por %p226, %p227
    %p229 = scmp.ne.s32.totalorder %s220, %s221
    %p230 = scmp.eq.s32.totalorder %s21, 0
    %p231 = por %p229, %p230
    %p232 = scmp.ne.s32.totalorder %s220, %s221
    %p233 = scmp.eq.s32.totalorder %s22, 1
    %p234 = por %p232, %p233
    %p236 = scmp.ne.s32.totalorder %s221, %s235
    %p237 = scmp.eq.s32.totalorder %s22, 0
    %p238 = por %p236, %p237
    %s239 = ssub.s32 %s16, %s23
    %p240 = scmp.eq.s32.totalorder %s239, 0
    %s242 = sadd.s32 %s241, 1
    %s243 = scalar_select %p240, %s241, %s242
    %p246 = pneg %p240
    %p247 = scmp.eq.s32.totalorder %s16, 1
    %p248 = por %p246, %p247
    %p249 = scmp.ne.s32.totalorder %s241, %s244
    %p250 = scmp.eq.s32.totalorder %s16, 0
    %p251 = por %p249, %p250
    %p252 = scmp.ne.s32.totalorder %s241, %s244
    %p253 = scmp.eq.s32.totalorder %s21, 1
    %p254 = por %p252, %p253
    %p255 = scmp.ne.s32.totalorder %s244, %s245
    %p256 = scmp.eq.s32.totalorder %s21, 0
    %p257 = por %p255, %p256
    %p258 = scmp.ne.s32.totalorder %s244, %s245
    %p259 = scmp.eq.s32.totalorder %s22, 1
    %p260 = por %p258, %p259
    %p262 = scmp.ne.s32.totalorder %s245, %s261
    %p263 = scmp.eq.s32.totalorder %s22, 0
    %p264 = por %p262, %p263
    %p265 = scmp.le.s32.totalorder 1, %s16
    %p266 = scmp.lt.s32.totalorder %s16, 3
    %p267 = pnand %p265, %p266
    %p268 = pneg %p267
    // Predicated region
    $region9: #{_forward_impl.1} parent=5 // pred_check
      _
    $region10: #{_forward_impl.1} parent=5 // pred_check_branch
      %270 = sbr.rel (%p267) target = $region12
    $region11: #{_forward_impl.1} parent=5 // pred_region
      %s271 = ssub.s32 %s16, 1
      // Predicated region
      $region13: #{_forward_impl.1} parent=11 // pred_check
        %p272 = pneg %p63
      $region14: #{_forward_impl.1} parent=11 // pred_check_branch
        %274 = sbr.rel (%p272) target = $region16
      $region15: #{_forward_impl.1} parent=11 // pred_region
        _
      $region16: #{_forward_impl.1} parent=11 // pred_fallthru
        _
      // Predicated region
      $region17: #{_forward_impl.1} parent=11 // pred_check
        %p275 = pneg %p84
      $region18: #{_forward_impl.1} parent=11 // pred_check_branch
        %277 = sbr.rel (%p275) target = $region20
      $region19: #{_forward_impl.1} parent=11 // pred_region
        _
      $region20: #{_forward_impl.1} parent=11 // pred_fallthru
        _
      // Predicated region
      $region21: #{_forward_impl.1} parent=11 // pred_check
        %p278 = pneg %p105
      $region22: #{_forward_impl.1} parent=11 // pred_check_branch
        %280 = sbr.rel (%p278) target = $region24
      $region23: #{_forward_impl.1} parent=11 // pred_region
        _
      $region24: #{_forward_impl.1} parent=11 // pred_fallthru
        _
      // Predicated region
      $region25: #{_forward_impl.1} parent=11 // pred_check
        %p281 = pneg %p126
      $region26: #{_forward_impl.1} parent=11 // pred_check_branch
        %283 = sbr.rel (%p281) target = $region28
      $region27: #{_forward_impl.1} parent=11 // pred_region
        _
      $region28: #{_forward_impl.1} parent=11 // pred_fallthru
        _
      // Predicated region
      $region29: #{_forward_impl.1} parent=11 // pred_check
        %p284 = pneg %p147
      $region30: #{_forward_impl.1} parent=11 // pred_check_branch
        %286 = sbr.rel (%p284) target = $region32
      $region31: #{_forward_impl.1} parent=11 // pred_region
        _
      $region32: #{_forward_impl.1} parent=11 // pred_fallthru
        _
      // Predicated region
      $region33: #{_forward_impl.1} parent=11 // pred_check
        %p287 = pneg %p168
      $region34: #{_forward_impl.1} parent=11 // pred_check_branch
        %289 = sbr.rel (%p287) target = $region36
      $region35: #{_forward_impl.1} parent=11 // pred_region
        _
      $region36: #{_forward_impl.1} parent=11 // pred_fallthru
        _
      // Predicated region
      $region37: #{_forward_impl.1} parent=11 // pred_check
        %p290 = pneg %p189
      $region38: #{_forward_impl.1} parent=11 // pred_check_branch
        %292 = sbr.rel (%p290) target = $region40
      $region39: #{_forward_impl.1} parent=11 // pred_region
        _
      $region40: #{_forward_impl.1} parent=11 // pred_fallthru
        _
      // Predicated region
      $region41: #{_forward_impl.1} parent=11 // pred_check
        %p293 = pneg %p210
      $region42: #{_forward_impl.1} parent=11 // pred_check_branch
        %295 = sbr.rel (%p293) target = $region44
      $region43: #{_forward_impl.1} parent=11 // pred_region
        _
      $region44: #{_forward_impl.1} parent=11 // pred_fallthru
        _
      // Predicated region
      $region45: #{_forward_impl.1} parent=11 // pred_check
        %p296 = pneg %p231
      $region46: #{_forward_impl.1} parent=11 // pred_check_branch
        %298 = sbr.rel (%p296) target = $region48
      $region47: #{_forward_impl.1} parent=11 // pred_region
        _
      $region48: #{_forward_impl.1} parent=11 // pred_fallthru
        _
    $region12: #{_forward_impl.1} parent=5 // pred_fallthru
      _
    %p299 = scmp.lt.s32.totalorder %s16, 2
    // Predicated region
    $region49: #{_forward_impl.1} parent=5 // pred_check
      %p300 = pneg %p299
    $region50: #{_forward_impl.1} parent=5 // pred_check_branch
      %302 = sbr.rel (%p300) target = $region52
    $region51: #{_forward_impl.1} parent=5 // pred_region
      // Predicated region
      $region53: #{_forward_impl.1} parent=51 // pred_check
        %p303 = pneg %p36
      $region54: #{_forward_impl.1} parent=51 // pred_check_branch
        %305 = sbr.rel (%p303) target = $region56
      $region55: #{_forward_impl.1} parent=51 // pred_region
        %s306 = smul.u32 4, %s16
        %p307 = scmp.lt.s32.totalorder %s306, 7
        %s308 = scalar_select %p307, %s306, 7
        %s309 = smul.addr %s308, 4
        %s310 = smul.addr %s309, 8
        %s311 = scalar_lea.vmem %s0, %s310
        %s312 = smul.u32 4, %s16
      $region56: #{_forward_impl.1} parent=51 // pred_fallthru
        _
    $region52: #{_forward_impl.1} parent=5 // pred_fallthru
      _
    %p313 = scmp.le.s32.totalorder 1, %s16
    %p314 = scmp.lt.s32.totalorder %s16, 3
    %p315 = pnand %p313, %p314
    %p316 = pneg %p315
    // Predicated region
    $region57: #{_forward_impl.1} parent=5 // pred_check
      _
    $region58: #{_forward_impl.1} parent=5 // pred_check_branch
      %318 = sbr.rel (%p315) target = $region60
    $region59: #{_forward_impl.1} parent=5 // pred_region
      %s319 = ssub.s32 %s16, 1
      %s320 = smul.u32 4, %s21
      %p321 = scmp.lt.s32.totalorder %s320, 7
      %s322 = scalar_select %p321, %s320, 7
      %s323 = smul.addr %s322, 4
      %s324 = smul.addr %s323, 8
      %s325 = scalar_lea.vmem %s0, %s324
      %p326 = pneg %p42
      %p327 = pneg %p39
      %p328 = pneg %p63
      %p329 = pneg %p60
      %p330 = pneg %p84
      %p331 = pneg %p81
      %p332 = pneg %p105
      %p333 = pneg %p102
      %p334 = pneg %p126
      %p335 = pneg %p123
      %p336 = pneg %p147
      %p337 = pneg %p144
      %p338 = pneg %p168
      %p339 = pneg %p165
      %p340 = pneg %p189
      %p341 = pneg %p186
      %p342 = pneg %p210
      %p343 = pneg %p207
      %p344 = pneg %p231
      %p345 = pneg %p228
      %p346 = pneg %p257
      %p347 = pneg %p254
      %s348 = smul.u32 4, %s21
      %p349 = scmp.lt.s32.totalorder %s348, 7
      %s350 = scalar_select %p349, %s348, 7
      %s351 = smul.addr %s350, 4
      %s352 = smul.addr %s351, 8
      %s353 = scalar_lea.vmem %s10, %s352
      %s354 = smul.u32 4, %s21
      %p355 = scmp.lt.s32.totalorder %s354, 7
      %s356 = scalar_select %p355, %s354, 7
      %s357 = smul.addr %s356, 4
      %s358 = smul.addr %s357, 8
      %s359 = scalar_lea.vmem %s0, %s358
      %s360 = smul.u32 4, %s21
      %s361 = smul.u32 4, %s21
      %p362 = scmp.lt.s32.totalorder %s361, 7
      %s363 = scalar_select %p362, %s361, 7
      %s364 = smul.addr %s363, 4
      %s365 = smul.addr %s364, 8
      %s366 = scalar_lea.vmem %s10, %s365
      %s367 = smul.u32 4, %s21
      %v369 = vld [vmem:[%s8] sm:$0xf]
      %v370 = vld [vmem:[%s9] sm:$0xf]
      %v371 = vld [vmem:[%s8] sm:$0x1]
      %v372 = vld [vmem:[%s9] sm:$0x1]
      %v373 = vld [vmem:[%s359] sm:$0xff]
      %v374 = vld [vmem:[%s359 + $0x8] sm:$0xff]
      %v375 = vld [vmem:[%s359 + $0x10] sm:$0xff]
      %v376 = vld [vmem:[%s359 + $0x18] sm:$0xff]
      %377 = vrot.lane.b32.xlu0 %v373, 1
      %v378 = vpop.permute.xlu0 %377
      %379 = vrot.lane.b32.xlu0 %v374, 1
      %v380 = vpop.permute.xlu0 %379
      %381 = vrot.lane.b32.xlu0 %v375, 1
      %v382 = vpop.permute.xlu0 %381
      %383 = vrot.lane.b32.xlu0 %v376, 1
      %v384 = vpop.permute.xlu0 %383
      %v386 = vlaneseq
      %v387 = vshrl.u32 %v386, 7
      %v388 = vsub.s32 0, %v387
      %v389 = vrot.slane %v371, %v388
      %v391 = vmul.f32 %v389, %v378
      %v392 = vmul.f32 %v389, %v380
      %v393 = vmul.f32 %v389, %v382
      %v394 = vmul.f32 %v389, %v384
      %v395 = vpack.c.bf16 %v392, %v391
      %v396 = vpack.c.bf16 %v394, %v393
      %397 = vst [vmem:[#allocation2] sm:$0xff] %v395
      %398 = vst [vmem:[#allocation2 + $0x20] sm:$0xff] %v396
      %v399 = vpack.c.bf16 %v374, %v373
      %v400 = vpack.c.bf16 %v376, %v375
      %401 = vst [vmem:[#allocation2 + $0x40] sm:$0xff] %v399
      %402 = vst [vmem:[#allocation2 + $0x60] sm:$0xff] %v400
      %403 = vrot.lane.b32.xlu0 %v373, 127
      %v404 = vpop.permute.xlu0 %403
      %405 = vrot.lane.b32.xlu0 %v374, 127
      %v406 = vpop.permute.xlu0 %405
      %407 = vrot.lane.b32.xlu0 %v375, 127
      %v408 = vpop.permute.xlu0 %407
      %409 = vrot.lane.b32.xlu0 %v376, 127
      %v410 = vpop.permute.xlu0 %409
      %v412 = vlaneseq
      %v413 = vshrl.u32 %v412, 7
      %v414 = vsub.s32 0, %v413
      %v415 = vrot.slane %v372, %v414
      %v417 = vmul.f32 %v415, %v404
      %v418 = vmul.f32 %v415, %v406
      %v419 = vmul.f32 %v415, %v408
      %v420 = vmul.f32 %v415, %v410
      %v421 = vpack.c.bf16 %v418, %v417
      %v422 = vpack.c.bf16 %v420, %v419
      %423 = vst [vmem:[#allocation2 + $0x80] sm:$0xff] %v421
      %424 = vst [vmem:[#allocation2 + $0xa0] sm:$0xff] %v422
      %s425 = scalar_lea.vmem %s359, 32
      %v426 = vld [vmem:[%s425] sm:$0xff]
      %v427 = vld [vmem:[%s425 + $0x8] sm:$0xff]
      %v428 = vld [vmem:[%s425 + $0x10] sm:$0xff]
      %v429 = vld [vmem:[%s425 + $0x18] sm:$0xff]
      %430 = vrot.lane.b32.xlu0 %v426, 1
      %v431 = vpop.permute.xlu0 %430
      %432 = vrot.lane.b32.xlu0 %v427, 1
      %v433 = vpop.permute.xlu0 %432
      %434 = vrot.lane.b32.xlu0 %v428, 1
      %v435 = vpop.permute.xlu0 %434
      %436 = vrot.lane.b32.xlu0 %v429, 1
      %v437 = vpop.permute.xlu0 %436
      %v438 = vmul.f32 %v389, %v431
      %v439 = vmul.f32 %v389, %v433
      %v440 = vmul.f32 %v389, %v435
      %v441 = vmul.f32 %v389, %v437
      %v442 = vpack.c.bf16 %v439, %v438
      %v443 = vpack.c.bf16 %v441, %v440
      %444 = vst [vmem:[#allocation2 + $0x8] sm:$0xff] %v442
      %445 = vst [vmem:[#allocation2 + $0x28] sm:$0xff] %v443
      %v446 = vpack.c.bf16 %v427, %v426
      %v447 = vpack.c.bf16 %v429, %v428
      %448 = vst [vmem:[#allocation2 + $0x48] sm:$0xff] %v446
      %449 = vst [vmem:[#allocation2 + $0x68] sm:$0xff] %v447
      %450 = vrot.lane.b32.xlu0 %v426, 127
      %v451 = vpop.permute.xlu0 %450
      %452 = vrot.lane.b32.xlu0 %v427, 127
      %v453 = vpop.permute.xlu0 %452
      %454 = vrot.lane.b32.xlu0 %v428, 127
      %v455 = vpop.permute.xlu0 %454
      %456 = vrot.lane.b32.xlu0 %v429, 127
      %v457 = vpop.permute.xlu0 %456
      %v458 = vmul.f32 %v415, %v451
      %v459 = vmul.f32 %v415, %v453
      %v460 = vmul.f32 %v415, %v455
      %v461 = vmul.f32 %v415, %v457
      %v462 = vpack.c.bf16 %v459, %v458
      %v463 = vpack.c.bf16 %v461, %v460
      %464 = vst [vmem:[#allocation2 + $0x88] sm:$0xff] %v462
      %465 = vst [vmem:[#allocation2 + $0xa8] sm:$0xff] %v463
      %s466 = scalar_lea.vmem %s359, 64
      %v467 = vld [vmem:[%s466] sm:$0xff]
      %v468 = vld [vmem:[%s466 + $0x8] sm:$0xff]
      %v469 = vld [vmem:[%s466 + $0x10] sm:$0xff]
      %v470 = vld [vmem:[%s466 + $0x18] sm:$0xff]
      %471 = vrot.lane.b32.xlu0 %v467, 1
      %v472 = vpop.permute.xlu0 %471
      %473 = vrot.lane.b32.xlu0 %v468, 1
      %v474 = vpop.permute.xlu0 %473
      %475 = vrot.lane.b32.xlu0 %v469, 1
      %v476 = vpop.permute.xlu0 %475
      %477 = vrot.lane.b32.xlu0 %v470, 1
      %v478 = vpop.permute.xlu0 %477
      %v479 = vmul.f32 %v389, %v472
      %v480 = vmul.f32 %v389, %v474
      %v481 = vmul.f32 %v389, %v476
      %v482 = vmul.f32 %v389, %v478
      %v483 = vpack.c.bf16 %v480, %v479
      %v484 = vpack.c.bf16 %v482, %v481
      %485 = vst [vmem:[#allocation2 + $0x10] sm:$0xff] %v483
      %486 = vst [vmem:[#allocation2 + $0x30] sm:$0xff] %v484
      %v487 = vpack.c.bf16 %v468, %v467
      %v488 = vpack.c.bf16 %v470, %v469
      %489 = vst [vmem:[#allocation2 + $0x50] sm:$0xff] %v487
      %490 = vst [vmem:[#allocation2 + $0x70] sm:$0xff] %v488
      %491 = vrot.lane.b32.xlu0 %v467, 127
      %v492 = vpop.permute.xlu0 %491
      %493 = vrot.lane.b32.xlu0 %v468, 127
      %v494 = vpop.permute.xlu0 %493
      %495 = vrot.lane.b32.xlu0 %v469, 127
      %v496 = vpop.permute.xlu0 %495
      %497 = vrot.lane.b32.xlu0 %v470, 127
      %v498 = vpop.permute.xlu0 %497
      %v499 = vmul.f32 %v415, %v492
      %v500 = vmul.f32 %v415, %v494
      %v501 = vmul.f32 %v415, %v496
      %v502 = vmul.f32 %v415, %v498
      %v503 = vpack.c.bf16 %v500, %v499
      %v504 = vpack.c.bf16 %v502, %v501
      %505 = vst [vmem:[#allocation2 + $0x90] sm:$0xff] %v503
      %506 = vst [vmem:[#allocation2 + $0xb0] sm:$0xff] %v504
      %s507 = scalar_lea.vmem %s359, 96
      %v508 = vld [vmem:[%s507] sm:$0xff]
      %v509 = vld [vmem:[%s507 + $0x8] sm:$0xff]
      %v510 = vld [vmem:[%s507 + $0x10] sm:$0xff]
      %v511 = vld [vmem:[%s507 + $0x18] sm:$0xff]
      %512 = vrot.lane.b32.xlu0 %v508, 1
      %v513 = vpop.permute.xlu0 %512
      %514 = vrot.lane.b32.xlu0 %v509, 1
      %v515 = vpop.permute.xlu0 %514
      %516 = vrot.lane.b32.xlu0 %v510, 1
      %v517 = vpop.permute.xlu0 %516
      %518 = vrot.lane.b32.xlu0 %v511, 1
      %v519 = vpop.permute.xlu0 %518
      %v520 = vmul.f32 %v389, %v513
      %v521 = vmul.f32 %v389, %v515
      %v522 = vmul.f32 %v389, %v517
      %v523 = vmul.f32 %v389, %v519
      %v524 = vpack.c.bf16 %v521, %v520
      %v525 = vpack.c.bf16 %v523, %v522
      %526 = vst [vmem:[#allocation2 + $0x18] sm:$0xff] %v524
      %527 = vst [vmem:[#allocation2 + $0x38] sm:$0xff] %v525
      %v528 = vpack.c.bf16 %v509, %v508
      %v529 = vpack.c.bf16 %v511, %v510
      %530 = vst [vmem:[#allocation2 + $0x58] sm:$0xff] %v528
      %531 = vst [vmem:[#allocation2 + $0x78] sm:$0xff] %v529
      %532 = vrot.lane.b32.xlu0 %v508, 127
      %v533 = vpop.permute.xlu0 %532
      %534 = vrot.lane.b32.xlu0 %v509, 127
      %v535 = vpop.permute.xlu0 %534
      %536 = vrot.lane.b32.xlu0 %v510, 127
      %v537 = vpop.permute.xlu0 %536
      %538 = vrot.lane.b32.xlu0 %v511, 127
      %v539 = vpop.permute.xlu0 %538
      %v540 = vmul.f32 %v415, %v533
      %v541 = vmul.f32 %v415, %v535
      %v542 = vmul.f32 %v415, %v537
      %v543 = vmul.f32 %v415, %v539
      %v544 = vpack.c.bf16 %v541, %v540
      %v545 = vpack.c.bf16 %v543, %v542
      %546 = vst [vmem:[#allocation2 + $0x98] sm:$0xff] %v544
      %547 = vst [vmem:[#allocation2 + $0xb8] sm:$0xff] %v545
      %v548 = vld [vmem:[%s1] sm:$0xf]
      %v549 = vld [vmem:[%s1 + $0x4] sm:$0xf]
      %v550 = vld [vmem:[%s1 + $0x8] sm:$0xf]
      %v551 = vld [vmem:[%s1 + $0xc] sm:$0xf]
      %v552 = vld [vmem:[#allocation2] sm:$0xff]
      %v553 = vld [vmem:[#allocation2 + $0x8] sm:$0xff]
      %v554 = vld [vmem:[#allocation2 + $0x10] sm:$0xff]
      %v555 = vld [vmem:[#allocation2 + $0x18] sm:$0xff]
      %v556 = vld [vmem:[#allocation2 + $0x20] sm:$0xff]
      %v557 = vld [vmem:[#allocation2 + $0x28] sm:$0xff]
      %v558 = vld [vmem:[#allocation2 + $0x30] sm:$0xff]
      %v559 = vld [vmem:[#allocation2 + $0x38] sm:$0xff]
      %v560 = vld [vmem:[#allocation2 + $0x40] sm:$0xff]
      %v561 = vld [vmem:[#allocation2 + $0x48] sm:$0xff]
      %v562 = vld [vmem:[#allocation2 + $0x50] sm:$0xff]
      %v563 = vld [vmem:[#allocation2 + $0x58] sm:$0xff]
      %v564 = vld [vmem:[#allocation2 + $0x60] sm:$0xff]
      %v565 = vld [vmem:[#allocation2 + $0x68] sm:$0xff]
      %v566 = vld [vmem:[#allocation2 + $0x70] sm:$0xff]
      %v567 = vld [vmem:[#allocation2 + $0x78] sm:$0xff]
      %v568 = vld [vmem:[#allocation2 + $0x80] sm:$0xff]
      %v569 = vld [vmem:[#allocation2 + $0x88] sm:$0xff]
      %v570 = vld [vmem:[#allocation2 + $0x90] sm:$0xff]
      %v571 = vld [vmem:[#allocation2 + $0x98] sm:$0xff]
      %v572 = vld [vmem:[#allocation2 + $0xa0] sm:$0xff]
      %v573 = vld [vmem:[#allocation2 + $0xa8] sm:$0xff]
      %v574 = vld [vmem:[#allocation2 + $0xb0] sm:$0xff]
      %v575 = vld [vmem:[#allocation2 + $0xb8] sm:$0xff]
      %v576 = vld [vmem:[%s2] sm:$0xff]
      %v577 = vld [vmem:[%s2 + $0x8] sm:$0xff]
      %v578 = vld [vmem:[%s2 + $0x10] sm:$0xff]
      %v579 = vld [vmem:[%s2 + $0x18] sm:$0xff]
      %581 = vset.pattern.permute.xlu0 0
      %582 = vperm.xlu0 %581, %v576
      %v583 = vpop.permute.xlu0 %582
      %586 = vset.pattern.permute.xlu0 0
      %587 = vperm.xlu0 %586, %v577
      %v588 = vpop.permute.xlu0 %587
      %591 = vset.pattern.permute.xlu0 0
      %592 = vperm.xlu0 %591, %v578
      %v593 = vpop.permute.xlu0 %592
      %596 = vset.pattern.permute.xlu0 0
      %597 = vperm.xlu0 %596, %v579
      %v598 = vpop.permute.xlu0 %597
      %v604 = vunpack.c.l.b16 %v548
      %v605 = vunpack.c.l.b16 %v549
      %v606 = vunpack.c.l.b16 %v550
      %v607 = vunpack.c.l.b16 %v551
      %v608 = vpack.c.b16 %v605, %v604
      %v609 = vpack.c.b16 %v607, %v606
      %vm610 = vcmask 785408
      %v612 = vsel %vm610, %v608, 0
      %v615 = vsel %vm610, %v609, 0
      %617 = vmatprep.subr.bf16.mxu0 %v553
      %618 = vmatpush1.bf16.msra.mxu0 %v552
      %619 = vmatprep.subr.bf16.mxu0 %v557
      %620 = vmatpush1.bf16.msra.mxu0 %v556
      %621 = vmatprep.subr.bf16.mxu0 %v561
      %622 = vmatpush1.bf16.msra.mxu0 %v560
      %623 = vmatprep.subr.bf16.mxu0 %v565
      %624 = vmatpush1.bf16.msra.mxu0 %v564
      %625 = vmatprep.subr.bf16.mxu0 %v569
      %626 = vmatpush1.bf16.msra.mxu0 %v568
      %627 = vmatprep.subr.bf16.mxu0 %v573
      %628 = vmatpush1.bf16.msra.mxu0 %v572
      %629 = vmatprep.subr.bf16.mxu0 0
      %630 = vmatpush1.bf16.msra.mxu0 0
      %631 = vmatprep.subr.bf16.mxu0 0
      %632 = vmatpush1.bf16.msra.mxu0 0
      %633 = vmatprep.subr.bf16.mxu0 0
      %634 = vmatpush1.bf16.msra.mxu0 0
      %635 = vmatprep.subr.bf16.mxu0 0
      %636 = vmatpush1.bf16.msra.mxu0 0
      %637 = vmatprep.subr.bf16.mxu0 0
      %638 = vmatpush1.bf16.msra.mxu0 0
      %639 = vmatprep.subr.bf16.mxu0 0
      %640 = vmatpush1.bf16.msra.mxu0 0
      %641 = vmatprep.subr.bf16.mxu0 0
      %642 = vmatpush1.bf16.msra.mxu0 0
      %643 = vmatprep.subr.bf16.mxu0 0
      %644 = vmatpush1.bf16.msra.mxu0 0
      %645 = vmatprep.subr.bf16.mxu0 0
      %646 = vmatpush1.bf16.msra.mxu0 0
      %647 = vmatprep.subr.bf16.mxu0 0
      %648 = vmatpush1.bf16.msra.mxu0 0
      %649 = vmatprep.mubr.bf16.mxu0 0
      %650 = vmatmul.mubr.bf16.gmra.mrb[0].mxu0 %v612
      %v651 = vpop.f32.mrb[0].mxu0
      %v652 = vadd.f32 %v583, %v651
      %v653 = vpop.f32.mrb[0].mxu0
      %v654 = vadd.f32 %v583, %v653
      %v655 = vpop.f32.mrb[0].mxu0
      %v656 = vadd.f32 %v588, %v655
      %v657 = vpop.f32.mrb[0].mxu0
      %v658 = vadd.f32 %v588, %v657
      %659 = vmatprep.mubr.bf16.mxu0 0
      %660 = vmatmul.mubr.bf16.gmra.mrb[0].mxu0 %v615
      %v661 = vpop.f32.mrb[0].mxu0
      %v662 = vadd.f32 %v593, %v661
      %v663 = vpop.f32.mrb[0].mxu0
      %v664 = vadd.f32 %v593, %v663
      %v665 = vpop.f32.mrb[0].mxu0
      %v666 = vadd.f32 %v598, %v665
      %v667 = vpop.f32.mrb[0].mxu0
      %v668 = vadd.f32 %v598, %v667
      %669 = vdwg.mxu0
      %670 = vmatprep.subr.bf16.mxu0 %v555
      %671 = vmatpush1.bf16.msra.mxu0 %v554
      %672 = vmatprep.subr.bf16.mxu0 %v559
      %673 = vmatpush1.bf16.msra.mxu0 %v558
      %674 = vmatprep.subr.bf16.mxu0 %v563
      %675 = vmatpush1.bf16.msra.mxu0 %v562
      %676 = vmatprep.subr.bf16.mxu0 %v567
      %677 = vmatpush1.bf16.msra.mxu0 %v566
      %678 = vmatprep.subr.bf16.mxu0 %v571
      %679 = vmatpush1.bf16.msra.mxu0 %v570
      %680 = vmatprep.subr.bf16.mxu0 %v575
      %681 = vmatpush1.bf16.msra.mxu0 %v574
      %682 = vmatprep.subr.bf16.mxu0 0
      %683 = vmatpush1.bf16.msra.mxu0 0
      %684 = vmatprep.subr.bf16.mxu0 0
      %685 = vmatpush1.bf16.msra.mxu0 0
      %686 = vmatprep.subr.bf16.mxu0 0
      %687 = vmatpush1.bf16.msra.mxu0 0
      %688 = vmatprep.subr.bf16.mxu0 0
      %689 = vmatpush1.bf16.msra.mxu0 0
      %690 = vmatprep.subr.bf16.mxu0 0
      %691 = vmatpush1.bf16.msra.mxu0 0
      %692 = vmatprep.subr.bf16.mxu0 0
      %693 = vmatpush1.bf16.msra.mxu0 0
      %694 = vmatprep.subr.bf16.mxu0 0
      %695 = vmatpush1.bf16.msra.mxu0 0
      %696 = vmatprep.subr.bf16.mxu0 0
      %697 = vmatpush1.bf16.msra.mxu0 0
      %698 = vmatprep.subr.bf16.mxu0 0
      %699 = vmatpush1.bf16.msra.mxu0 0
      %700 = vmatprep.subr.bf16.mxu0 0
      %701 = vmatpush1.bf16.msra.mxu0 0
      %702 = vmatprep.mubr.bf16.mxu0 0
      %703 = vmatmul.mubr.bf16.gmra.mrb[0].mxu0 %v612
      %v704 = vpop.f32.mrb[0].mxu0
      %v705 = vadd.f32 %v583, %v704
      %v706 = vpop.f32.mrb[0].mxu0
      %v707 = vadd.f32 %v583, %v706
      %v708 = vpop.f32.mrb[0].mxu0
      %v709 = vadd.f32 %v588, %v708
      %v710 = vpop.f32.mrb[0].mxu0
      %v711 = vadd.f32 %v588, %v710
      %712 = vmatprep.mubr.bf16.mxu0 0
      %713 = vmatmul.mubr.bf16.gmra.mrb[0].mxu0 %v615
      %v714 = vpop.f32.mrb[0].mxu0
      %v715 = vadd.f32 %v593, %v714
      %v716 = vpop.f32.mrb[0].mxu0
      %v717 = vadd.f32 %v593, %v716
      %v718 = vpop.f32.mrb[0].mxu0
      %v719 = vadd.f32 %v598, %v718
      %v720 = vpop.f32.mrb[0].mxu0
      %v721 = vadd.f32 %v598, %v720
      %722 = vdwg.mxu0
      %v723 = vmax.f32 %v652, 0.0
      %v724 = vmax.f32 %v654, 0.0
      %v725 = vmax.f32 %v705, 0.0
      %v726 = vmax.f32 %v707, 0.0
      %v727 = vmax.f32 %v656, 0.0
      %v728 = vmax.f32 %v658, 0.0
      %v729 = vmax.f32 %v709, 0.0
      %v730 = vmax.f32 %v711, 0.0
      %v731 = vmax.f32 %v662, 0.0
      %v732 = vmax.f32 %v664, 0.0
      %v733 = vmax.f32 %v715, 0.0
      %v734 = vmax.f32 %v717, 0.0
      %v735 = vmax.f32 %v666, 0.0
      %v736 = vmax.f32 %v668, 0.0
      %v737 = vmax.f32 %v719, 0.0
      %v738 = vmax.f32 %v721, 0.0
      %739 = vrot.lane.b32.xlu0 %v723, 1
      %v740 = vpop.permute.xlu0 %739
      %741 = vrot.lane.b32.xlu0 %v727, 1
      %v742 = vpop.permute.xlu0 %741
      %743 = vrot.lane.b32.xlu0 %v731, 1
      %v744 = vpop.permute.xlu0 %743
      %745 = vrot.lane.b32.xlu0 %v735, 1
      %v746 = vpop.permute.xlu0 %745
      %747 = vrot.lane.b32.xlu0 %v724, 1
      %v748 = vpop.permute.xlu0 %747
      %749 = vrot.lane.b32.xlu0 %v728, 1
      %v750 = vpop.permute.xlu0 %749
      %751 = vrot.lane.b32.xlu0 %v732, 1
      %v752 = vpop.permute.xlu0 %751
      %753 = vrot.lane.b32.xlu0 %v736, 1
      %v754 = vpop.permute.xlu0 %753
      %755 = vrot.lane.b32.xlu0 %v725, 1
      %v756 = vpop.permute.xlu0 %755
      %757 = vrot.lane.b32.xlu0 %v729, 1
      %v758 = vpop.permute.xlu0 %757
      %759 = vrot.lane.b32.xlu0 %v733, 1
      %v760 = vpop.permute.xlu0 %759
      %761 = vrot.lane.b32.xlu0 %v737, 1
      %v762 = vpop.permute.xlu0 %761
      %763 = vrot.lane.b32.xlu0 %v726, 1
      %v764 = vpop.permute.xlu0 %763
      %765 = vrot.lane.b32.xlu0 %v730, 1
      %v766 = vpop.permute.xlu0 %765
      %767 = vrot.lane.b32.xlu0 %v734, 1
      %v768 = vpop.permute.xlu0 %767
      %769 = vrot.lane.b32.xlu0 %v738, 1
      %v770 = vpop.permute.xlu0 %769
      %v771 = vlaneseq
      %v772 = vand.u32 %v771, 127
      %vm773 = vcmp.lt.s32.totalorder %v772, 1
      %v774 = vsel %vm773, %v756, %v764
      %v775 = vsel %vm773, %v758, %v766
      %v776 = vsel %vm773, %v760, %v768
      %v777 = vsel %vm773, %v762, %v770
      %v778 = vsel %vm773, %v748, %v756
      %v779 = vsel %vm773, %v750, %v758
      %v780 = vsel %vm773, %v752, %v760
      %v781 = vsel %vm773, %v754, %v762
      %v782 = vsel %vm773, %v740, %v748
      %v783 = vsel %vm773, %v742, %v750
      %v784 = vsel %vm773, %v744, %v752
      %v785 = vsel %vm773, %v746, %v754
      %v786 = vsel %vm773, %v764, %v740
      %v787 = vsel %vm773, %v766, %v742
      %v788 = vsel %vm773, %v768, %v744
      %v789 = vsel %vm773, %v770, %v746
      %v791 = vlaneseq
      %v792 = vshrl.u32 %v791, 7
      %v793 = vsub.s32 0, %v792
      %v794 = vrot.slane %v369, %v793
      %v795 = vlaneseq
      %v796 = vshrl.u32 %v795, 7
      %v797 = vsub.s32 1, %v796
      %v798 = vrot.slane %v369, %v797
      %v799 = vlaneseq
      %v800 = vshrl.u32 %v799, 7
      %v801 = vsub.s32 2, %v800
      %v802 = vrot.slane %v369, %v801
      %v803 = vlaneseq
      %v804 = vshrl.u32 %v803, 7
      %v805 = vsub.s32 3, %v804
      %v806 = vrot.slane %v369, %v805
      %v811 = vmul.f32 %v794, %v786
      %v812 = vmul.f32 %v798, %v782
      %v813 = vmul.f32 %v802, %v778
      %v814 = vmul.f32 %v806, %v774
      %v815 = vmul.f32 %v794, %v787
      %v816 = vmul.f32 %v798, %v783
      %v817 = vmul.f32 %v802, %v779
      %v818 = vmul.f32 %v806, %v775
      %v819 = vmul.f32 %v794, %v788
      %v820 = vmul.f32 %v798, %v784
      %v821 = vmul.f32 %v802, %v780
      %v822 = vmul.f32 %v806, %v776
      %v823 = vmul.f32 %v794, %v789
      %v824 = vmul.f32 %v798, %v785
      %v825 = vmul.f32 %v802, %v781
      %v826 = vmul.f32 %v806, %v777
      %v827 = vpack.c.bf16 %v815, %v811
      %v828 = vpack.c.bf16 %v816, %v812
      %v829 = vpack.c.bf16 %v817, %v813
      %v830 = vpack.c.bf16 %v818, %v814
      %v831 = vpack.c.bf16 %v823, %v819
      %v832 = vpack.c.bf16 %v824, %v820
      %v833 = vpack.c.bf16 %v825, %v821
      %v834 = vpack.c.bf16 %v826, %v822
      %835 = vst [vmem:[#allocation2] sm:$0xff] %v827
      %836 = vst [vmem:[#allocation2 + $0x8] sm:$0xff] %v828
      %837 = vst [vmem:[#allocation2 + $0x10] sm:$0xff] %v829
      %838 = vst [vmem:[#allocation2 + $0x18] sm:$0xff] %v830
      %839 = vst [vmem:[#allocation2 + $0x20] sm:$0xff] %v831
      %840 = vst [vmem:[#allocation2 + $0x28] sm:$0xff] %v832
      %841 = vst [vmem:[#allocation2 + $0x30] sm:$0xff] %v833
      %842 = vst [vmem:[#allocation2 + $0x38] sm:$0xff] %v834
      %v843 = vpack.c.bf16 %v727, %v723
      %v844 = vpack.c.bf16 %v728, %v724
      %v845 = vpack.c.bf16 %v729, %v725
      %v846 = vpack.c.bf16 %v730, %v726
      %v847 = vpack.c.bf16 %v735, %v731
      %v848 = vpack.c.bf16 %v736, %v732
      %v849 = vpack.c.bf16 %v737, %v733
      %v850 = vpack.c.bf16 %v738, %v734
      %851 = vst [vmem:[#allocation2 + $0x40] sm:$0xff] %v843
      %852 = vst [vmem:[#allocation2 + $0x48] sm:$0xff] %v844
      %853 = vst [vmem:[#allocation2 + $0x50] sm:$0xff] %v845
      %854 = vst [vmem:[#allocation2 + $0x58] sm:$0xff] %v846
      %855 = vst [vmem:[#allocation2 + $0x60] sm:$0xff] %v847
      %856 = vst [vmem:[#allocation2 + $0x68] sm:$0xff] %v848
      %857 = vst [vmem:[#allocation2 + $0x70] sm:$0xff] %v849
      %858 = vst [vmem:[#allocation2 + $0x78] sm:$0xff] %v850
      %859 = vrot.lane.b32.xlu0 %v723, 127
      %v860 = vpop.permute.xlu0 %859
      %861 = vrot.lane.b32.xlu0 %v727, 127
      %v862 = vpop.permute.xlu0 %861
      %863 = vrot.lane.b32.xlu0 %v731, 127
      %v864 = vpop.permute.xlu0 %863
      %865 = vrot.lane.b32.xlu0 %v735, 127
      %v866 = vpop.permute.xlu0 %865
      %867 = vrot.lane.b32.xlu0 %v724, 127
      %v868 = vpop.permute.xlu0 %867
      %869 = vrot.lane.b32.xlu0 %v728, 127
      %v870 = vpop.permute.xlu0 %869
      %871 = vrot.lane.b32.xlu0 %v732, 127
      %v872 = vpop.permute.xlu0 %871
      %873 = vrot.lane.b32.xlu0 %v736, 127
      %v874 = vpop.permute.xlu0 %873
      %875 = vrot.lane.b32.xlu0 %v725, 127
      %v876 = vpop.permute.xlu0 %875
      %877 = vrot.lane.b32.xlu0 %v729, 127
      %v878 = vpop.permute.xlu0 %877
      %879 = vrot.lane.b32.xlu0 %v733, 127
      %v880 = vpop.permute.xlu0 %879
      %881 = vrot.lane.b32.xlu0 %v737, 127
      %v882 = vpop.permute.xlu0 %881
      %883 = vrot.lane.b32.xlu0 %v726, 127
      %v884 = vpop.permute.xlu0 %883
      %885 = vrot.lane.b32.xlu0 %v730, 127
      %v886 = vpop.permute.xlu0 %885
      %887 = vrot.lane.b32.xlu0 %v734, 127
      %v888 = vpop.permute.xlu0 %887
      %889 = vrot.lane.b32.xlu0 %v738, 127
      %v890 = vpop.permute.xlu0 %889
      %vm891 = vcmp.lt.s32.totalorder %v772, 127
      %v892 = vsel %vm891, %v876, %v884
      %v893 = vsel %vm891, %v878, %v886
      %v894 = vsel %vm891, %v880, %v888
      %v895 = vsel %vm891, %v882, %v890
      %v896 = vsel %vm891, %v868, %v876
      %v897 = vsel %vm891, %v870, %v878
      %v898 = vsel %vm891, %v872, %v880
      %v899 = vsel %vm891, %v874, %v882
      %v900 = vsel %vm891, %v860, %v868
      %v901 = vsel %vm891, %v862, %v870
      %v902 = vsel %vm891, %v864, %v872
      %v903 = vsel %vm891, %v866, %v874
      %v904 = vsel %vm891, %v884, %v860
      %v905 = vsel %vm891, %v886, %v862
      %v906 = vsel %vm891, %v888, %v864
      %v907 = vsel %vm891, %v890, %v866
      %v909 = vlaneseq
      %v910 = vshrl.u32 %v909, 7
      %v911 = vsub.s32 0, %v910
      %v912 = vrot.slane %v370, %v911
      %v913 = vlaneseq
      %v914 = vshrl.u32 %v913, 7
      %v915 = vsub.s32 1, %v914
      %v916 = vrot.slane %v370, %v915
      %v917 = vlaneseq
      %v918 = vshrl.u32 %v917, 7
      %v919 = vsub.s32 2, %v918
      %v920 = vrot.slane %v370, %v919
      %v921 = vlaneseq
      %v922 = vshrl.u32 %v921, 7
      %v923 = vsub.s32 3, %v922
      %v924 = vrot.slane %v370, %v923
      %v929 = vmul.f32 %v912, %v900
      %v930 = vmul.f32 %v916, %v896
      %v931 = vmul.f32 %v920, %v892
      %v932 = vmul.f32 %v924, %v904
      %v933 = vmul.f32 %v912, %v901
      %v934 = vmul.f32 %v916, %v897
      %v935 = vmul.f32 %v920, %v893
      %v936 = vmul.f32 %v924, %v905
      %v937 = vmul.f32 %v912, %v902
      %v938 = vmul.f32 %v916, %v898
      %v939 = vmul.f32 %v920, %v894
      %v940 = vmul.f32 %v924, %v906
      %v941 = vmul.f32 %v912, %v903
      %v942 = vmul.f32 %v916, %v899
      %v943 = vmul.f32 %v920, %v895
      %v944 = vmul.f32 %v924, %v907
      %v945 = vpack.c.bf16 %v933, %v929
      %v946 = vpack.c.bf16 %v934, %v930
      %v947 = vpack.c.bf16 %v935, %v931
      %v948 = vpack.c.bf16 %v936, %v932
      %v949 = vpack.c.bf16 %v941, %v937
      %v950 = vpack.c.bf16 %v942, %v938
      %v951 = vpack.c.bf16 %v943, %v939
      %v952 = vpack.c.bf16 %v944, %v940
      %953 = vst [vmem:[#allocation2 + $0x80] sm:$0xff] %v945
      %954 = vst [vmem:[#allocation2 + $0x88] sm:$0xff] %v946
      %955 = vst [vmem:[#allocation2 + $0x90] sm:$0xff] %v947
      %956 = vst [vmem:[#allocation2 + $0x98] sm:$0xff] %v948
      %957 = vst [vmem:[#allocation2 + $0xa0] sm:$0xff] %v949
      %958 = vst [vmem:[#allocation2 + $0xa8] sm:$0xff] %v950
      %959 = vst [vmem:[#allocation2 + $0xb0] sm:$0xff] %v951
      %960 = vst [vmem:[#allocation2 + $0xb8] sm:$0xff] %v952
      %v961 = vld [vmem:[%s3] sm:$0xf]
      %v962 = vld [vmem:[%s3 + $0x4] sm:$0xf]
      %v963 = vld [vmem:[%s3 + $0x8] sm:$0xf]
      %v964 = vld [vmem:[%s3 + $0xc] sm:$0xf]
      %v965 = vld [vmem:[#allocation2] sm:$0xff]
      %v966 = vld [vmem:[#allocation2 + $0x8] sm:$0xff]
      %v967 = vld [vmem:[#allocation2 + $0x10] sm:$0xff]
      %v968 = vld [vmem:[#allocation2 + $0x18] sm:$0xff]
      %v969 = vld [vmem:[#allocation2 + $0x20] sm:$0xff]
      %v970 = vld [vmem:[#allocation2 + $0x28] sm:$0xff]
      %v971 = vld [vmem:[#allocation2 + $0x30] sm:$0xff]
      %v972 = vld [vmem:[#allocation2 + $0x38] sm:$0xff]
      %v973 = vld [vmem:[#allocation2 + $0x40] sm:$0xff]
      %v974 = vld [vmem:[#allocation2 + $0x48] sm:$0xff]
      %v975 = vld [vmem:[#allocation2 + $0x50] sm:$0xff]
      %v976 = vld [vmem:[#allocation2 + $0x58] sm:$0xff]
      %v977 = vld [vmem:[#allocation2 + $0x60] sm:$0xff]
      %v978 = vld [vmem:[#allocation2 + $0x68] sm:$0xff]
      %v979 = vld [vmem:[#allocation2 + $0x70] sm:$0xff]
      %v980 = vld [vmem:[#allocation2 + $0x78] sm:$0xff]
      %v981 = vld [vmem:[#allocation2 + $0x80] sm:$0xff]
      %v982 = vld [vmem:[#allocation2 + $0x88] sm:$0xff]
      %v983 = vld [vmem:[#allocation2 + $0x90] sm:$0xff]
      %v984 = vld [vmem:[#allocation2 + $0x98] sm:$0xff]
      %v985 = vld [vmem:[#allocation2 + $0xa0] sm:$0xff]
      %v986 = vld [vmem:[#allocation2 + $0xa8] sm:$0xff]
      %v987 = vld [vmem:[#allocation2 + $0xb0] sm:$0xff]
      %v988 = vld [vmem:[#allocation2 + $0xb8] sm:$0xff]
      %v989 = vld [vmem:[%s4] sm:$0xff]
      %v990 = vld [vmem:[%s4 + $0x8] sm:$0xff]
      %v991 = vld [vmem:[%s4 + $0x10] sm:$0xff]
      %v992 = vld [vmem:[%s4 + $0x18] sm:$0xff]
      %994 = vset.pattern.permute.xlu0 0
      %995 = vperm.xlu0 %994, %v989
      %v996 = vpop.permute.xlu0 %995
      %999 = vset.pattern.permute.xlu0 0
      %1000 = vperm.xlu0 %999, %v990
      %v1001 = vpop.permute.xlu0 %1000
      %1004 = vset.pattern.permute.xlu0 0
      %1005 = vperm.xlu0 %1004, %v991
      %v1006 = vpop.permute.xlu0 %1005
      %1009 = vset.pattern.permute.xlu0 0
      %1010 = vperm.xlu0 %1009, %v992
      %v1011 = vpop.permute.xlu0 %1010
      %v1017 = vunpack.c.l.b16 %v961
      %v1018 = vunpack.c.l.b16 %v962
      %v1019 = vunpack.c.l.b16 %v963
      %v1020 = vunpack.c.l.b16 %v964
      %v1021 = vpack.c.b16 %v1018, %v1017
      %v1022 = vpack.c.b16 %v1020, %v1019
      %v1024 = vsel %vm610, %v1021, 0
      %v1027 = vsel %vm610, %v1022, 0
      %1029 = vmatprep.subr.bf16.mxu0 %v966
      %1030 = vmatpush1.bf16.msra.mxu0 %v965
      %1031 = vmatprep.subr.bf16.mxu0 %v970
      %1032 = vmatpush1.bf16.msra.mxu0 %v969
      %1033 = vmatprep.subr.bf16.mxu0 %v974
      %1034 = vmatpush1.bf16.msra.mxu0 %v973
      %1035 = vmatprep.subr.bf16.mxu0 %v978
      %1036 = vmatpush1.bf16.msra.mxu0 %v977
      %1037 = vmatprep.subr.bf16.mxu0 %v982
      %1038 = vmatpush1.bf16.msra.mxu0 %v981
      %1039 = vmatprep.subr.bf16.mxu0 %v986
      %1040 = vmatpush1.bf16.msra.mxu0 %v985
      %1041 = vmatprep.subr.bf16.mxu0 0
      %1042 = vmatpush1.bf16.msra.mxu0 0
      %1043 = vmatprep.subr.bf16.mxu0 0
      %1044 = vmatpush1.bf16.msra.mxu0 0
      %1045 = vmatprep.subr.bf16.mxu0 0
      %1046 = vmatpush1.bf16.msra.mxu0 0
      %1047 = vmatprep.subr.bf16.mxu0 0
      %1048 = vmatpush1.bf16.msra.mxu0 0
      %1049 = vmatprep.subr.bf16.mxu0 0
      %1050 = vmatpush1.bf16.msra.mxu0 0
      %1051 = vmatprep.subr.bf16.mxu0 0
      %1052 = vmatpush1.bf16.msra.mxu0 0
      %1053 = vmatprep.subr.bf16.mxu0 0
      %1054 = vmatpush1.bf16.msra.mxu0 0
      %1055 = vmatprep.subr.bf16.mxu0 0
      %1056 = vmatpush1.bf16.msra.mxu0 0
      %1057 = vmatprep.subr.bf16.mxu0 0
      %1058 = vmatpush1.bf16.msra.mxu0 0
      %1059 = vmatprep.subr.bf16.mxu0 0
      %1060 = vmatpush1.bf16.msra.mxu0 0
      %1061 = vmatprep.mubr.bf16.mxu0 0
      %1062 = vmatmul.mubr.bf16.gmra.mrb[0].mxu0 %v1024
      %v1063 = vpop.f32.mrb[0].mxu0
      %v1064 = vadd.f32 %v996, %v1063
      %v1065 = vpop.f32.mrb[0].mxu0
      %v1066 = vadd.f32 %v996, %v1065
      %v1067 = vpop.f32.mrb[0].mxu0
      %v1068 = vadd.f32 %v1001, %v1067
      %v1069 = vpop.f32.mrb[0].mxu0
      %v1070 = vadd.f32 %v1001, %v1069
      %1071 = vmatprep.mubr.bf16.mxu0 0
      %1072 = vmatmul.mubr.bf16.gmra.mrb[0].mxu0 %v1027
      %v1073 = vpop.f32.mrb[0].mxu0
      %v1074 = vadd.f32 %v1006, %v1073
      %v1075 = vpop.f32.mrb[0].mxu0
      %v1076 = vadd.f32 %v1006, %v1075
      %v1077 = vpop.f32.mrb[0].mxu0
      %v1078 = vadd.f32 %v1011, %v1077
      %v1079 = vpop.f32.mrb[0].mxu0
      %v1080 = vadd.f32 %v1011, %v1079
      %1081 = vdwg.mxu0
      %1082 = vmatprep.subr.bf16.mxu0 %v968
      %1083 = vmatpush1.bf16.msra.mxu0 %v967
      %1084 = vmatprep.subr.bf16.mxu0 %v972
      %1085 = vmatpush1.bf16.msra.mxu0 %v971
      %1086 = vmatprep.subr.bf16.mxu0 %v976
      %1087 = vmatpush1.bf16.msra.mxu0 %v975
      %1088 = vmatprep.subr.bf16.mxu0 %v980
      %1089 = vmatpush1.bf16.msra.mxu0 %v979
      %1090 = vmatprep.subr.bf16.mxu0 %v984
      %1091 = vmatpush1.bf16.msra.mxu0 %v983
      %1092 = vmatprep.subr.bf16.mxu0 %v988
      %1093 = vmatpush1.bf16.msra.mxu0 %v987
      %1094 = vmatprep.subr.bf16.mxu0 0
      %1095 = vmatpush1.bf16.msra.mxu0 0
      %1096 = vmatprep.subr.bf16.mxu0 0
      %1097 = vmatpush1.bf16.msra.mxu0 0
      %1098 = vmatprep.subr.bf16.mxu0 0
      %1099 = vmatpush1.bf16.msra.mxu0 0
      %1100 = vmatprep.subr.bf16.mxu0 0
      %1101 = vmatpush1.bf16.msra.mxu0 0
      %1102 = vmatprep.subr.bf16.mxu0 0
      %1103 = vmatpush1.bf16.msra.mxu0 0
      %1104 = vmatprep.subr.bf16.mxu0 0
      %1105 = vmatpush1.bf16.msra.mxu0 0
      %1106 = vmatprep.subr.bf16.mxu0 0
      %1107 = vmatpush1.bf16.msra.mxu0 0
      %1108 = vmatprep.subr.bf16.mxu0 0
      %1109 = vmatpush1.bf16.msra.mxu0 0
      %1110 = vmatprep.subr.bf16.mxu0 0
      %1111 = vmatpush1.bf16.msra.mxu0 0
      %1112 = vmatprep.subr.bf16.mxu0 0
      %1113 = vmatpush1.bf16.msra.mxu0 0
      %1114 = vmatprep.mubr.bf16.mxu0 0
      %1115 = vmatmul.mubr.bf16.gmra.mrb[0].mxu0 %v1024
      %v1116 = vpop.f32.mrb[0].mxu0
      %v1117 = vadd.f32 %v996, %v1116
      %v1118 = vpop.f32.mrb[0].mxu0
      %v1119 = vadd.f32 %v996, %v1118
      %v1120 = vpop.f32.mrb[0].mxu0
      %v1121 = vadd.f32 %v1001, %v1120
      %v1122 = vpop.f32.mrb[0].mxu0
      %v1123 = vadd.f32 %v1001, %v1122
      %1124 = vmatprep.mubr.bf16.mxu0 0
      %1125 = vmatmul.mubr.bf16.gmra.mrb[0].mxu0 %v1027
      %v1126 = vpop.f32.mrb[0].mxu0
      %v1127 = vadd.f32 %v1006, %v1126
      %v1128 = vpop.f32.mrb[0].mxu0
      %v1129 = vadd.f32 %v1006, %v1128
      %v1130 = vpop.f32.mrb[0].mxu0
      %v1131 = vadd.f32 %v1011, %v1130
      %v1132 = vpop.f32.mrb[0].mxu0
      %v1133 = vadd.f32 %v1011, %v1132
      %1134 = vdwg.mxu0
      %v1135 = vld [vmem:[%s7] sm:$0xff]
      %v1136 = vld [vmem:[%s7 + $0x8] sm:$0xff]
      %v1137 = vld [vmem:[%s7 + $0x10] sm:$0xff]
      %v1138 = vld [vmem:[%s7 + $0x18] sm:$0xff]
      %v1139 = vld [vmem:[%s7 + $0x20] sm:$0xff]
      %v1140 = vld [vmem:[%s7 + $0x28] sm:$0xff]
      %v1141 = vld [vmem:[%s7 + $0x30] sm:$0xff]
      %v1142 = vld [vmem:[%s7 + $0x38] sm:$0xff]
      %v1143 = vld [vmem:[%s7 + $0x40] sm:$0xff]
      %v1144 = vld [vmem:[%s7 + $0x48] sm:$0xff]
      %v1145 = vld [vmem:[%s7 + $0x50] sm:$0xff]
      %v1146 = vld [vmem:[%s7 + $0x58] sm:$0xff]
      %v1147 = vld [vmem:[%s7 + $0x60] sm:$0xff]
      %v1148 = vld [vmem:[%s7 + $0x68] sm:$0xff]
      %v1149 = vld [vmem:[%s7 + $0x70] sm:$0xff]
      %v1150 = vld [vmem:[%s7 + $0x78] sm:$0xff]
      %v1151 = vld [vmem:[%s7 + $0x80] sm:$0xff]
      %v1152 = vld [vmem:[%s7 + $0x88] sm:$0xff]
      %v1153 = vld [vmem:[%s7 + $0x90] sm:$0xff]
      %v1154 = vld [vmem:[%s7 + $0x98] sm:$0xff]
      %v1155 = vld [vmem:[%s7 + $0xa0] sm:$0xff]
      %v1156 = vld [vmem:[%s7 + $0xa8] sm:$0xff]
      %v1157 = vld [vmem:[%s7 + $0xb0] sm:$0xff]
      %v1158 = vld [vmem:[%s7 + $0xb8] sm:$0xff]
      %v1159 = vld [vmem:[%s7 + $0xc0] sm:$0xff]
      %v1160 = vld [vmem:[%s7 + $0xc8] sm:$0xff]
      %v1161 = vld [vmem:[%s7 + $0xd0] sm:$0xff]
      %v1162 = vld [vmem:[%s7 + $0xd8] sm:$0xff]
      %v1163 = vld [vmem:[%s7 + $0xe0] sm:$0xff]
      %v1164 = vld [vmem:[%s7 + $0xe8] sm:$0xff]
      %v1165 = vld [vmem:[%s7 + $0xf0] sm:$0xff]
      %v1166 = vld [vmem:[%s7 + $0xf8] sm:$0xff]
      %v1167 = vld [vmem:[%s7 + $0x100] sm:$0xff]
      %v1168 = vld [vmem:[%s7 + $0x108] sm:$0xff]
      %v1169 = vld [vmem:[%s7 + $0x110] sm:$0xff]
      %v1170 = vld [vmem:[%s7 + $0x118] sm:$0xff]
      %v1171 = vld [vmem:[%s7 + $0x120] sm:$0xff]
      %v1172 = vld [vmem:[%s7 + $0x128] sm:$0xff]
      %v1173 = vld [vmem:[%s7 + $0x130] sm:$0xff]
      %v1174 = vld [vmem:[%s7 + $0x138] sm:$0xff]
      %v1175 = vld [vmem:[%s7 + $0x140] sm:$0xff]
      %v1176 = vld [vmem:[%s7 + $0x148] sm:$0xff]
      %v1177 = vld [vmem:[%s7 + $0x150] sm:$0xff]
      %v1178 = vld [vmem:[%s7 + $0x158] sm:$0xff]
      %v1179 = vld [vmem:[%s7 + $0x160] sm:$0xff]
      %v1180 = vld [vmem:[%s7 + $0x168] sm:$0xff]
      %v1181 = vld [vmem:[%s7 + $0x170] sm:$0xff]
      %v1182 = vld [vmem:[%s7 + $0x178] sm:$0xff]
      %v1183 = vld [vmem:[%s7 + $0x180] sm:$0xff]
      %v1184 = vld [vmem:[%s7 + $0x188] sm:$0xff]
      %v1185 = vld [vmem:[%s7 + $0x190] sm:$0xff]
      %v1186 = vld [vmem:[%s7 + $0x198] sm:$0xff]
      %v1187 = vld [vmem:[%s7 + $0x1a0] sm:$0xff]
      %v1188 = vld [vmem:[%s7 + $0x1a8] sm:$0xff]
      %v1189 = vld [vmem:[%s7 + $0x1b0] sm:$0xff]
      %v1190 = vld [vmem:[%s7 + $0x1b8] sm:$0xff]
      %v1191 = vld [vmem:[%s7 + $0x1c0] sm:$0xff]
      %v1192 = vld [vmem:[%s7 + $0x1c8] sm:$0xff]
      %v1193 = vld [vmem:[%s7 + $0x1d0] sm:$0xff]
      %v1194 = vld [vmem:[%s7 + $0x1d8] sm:$0xff]
      %v1195 = vld [vmem:[%s7 + $0x1e0] sm:$0xff]
      %v1196 = vld [vmem:[%s7 + $0x1e8] sm:$0xff]
      %v1197 = vld [vmem:[%s7 + $0x1f0] sm:$0xff]
      %v1198 = vld [vmem:[%s7 + $0x1f8] sm:$0xff]
      %1199 = vmatprep.subr.mxu0 0.0
      %1200 = vmatpush1.msra.mxu0 %v1135
      %1201 = vmatprep.subr.mxu0 0.0
      %1202 = vmatpush1.msra.mxu0 %v1136
      %1203 = vmatprep.subr.mxu0 0.0
      %1204 = vmatpush1.msra.mxu0 %v1137
      %1205 = vmatprep.subr.mxu0 0.0
      %1206 = vmatpush1.msra.mxu0 %v1138
      %1207 = vmatprep.subr.mxu0 0.0
      %1208 = vmatpush1.msra.mxu0 %v1139
      %1209 = vmatprep.subr.mxu0 0.0
      %1210 = vmatpush1.msra.mxu0 %v1140
      %1211 = vmatprep.subr.mxu0 0.0
      %1212 = vmatpush1.msra.mxu0 %v1141
      %1213 = vmatprep.subr.mxu0 0.0
      %1214 = vmatpush1.msra.mxu0 %v1142
      %1215 = vmatprep.subr.mxu0 0.0
      %1216 = vmatpush1.msra.mxu0 %v1143
      %1217 = vmatprep.subr.mxu0 0.0
      %1218 = vmatpush1.msra.mxu0 %v1144
      %1219 = vmatprep.subr.mxu0 0.0
      %1220 = vmatpush1.msra.mxu0 %v1145
      %1221 = vmatprep.subr.mxu0 0.0
      %1222 = vmatpush1.msra.mxu0 %v1146
      %1223 = vmatprep.subr.mxu0 0.0
      %1224 = vmatpush1.msra.mxu0 %v1147
      %1225 = vmatprep.subr.mxu0 0.0
      %1226 = vmatpush1.msra.mxu0 %v1148
      %1227 = vmatprep.subr.mxu0 0.0
      %1228 = vmatpush1.msra.mxu0 %v1149
      %1229 = vmatprep.subr.mxu0 0.0
      %1230 = vmatpush1.msra.mxu0 %v1150
      %1231 = vmatprep.subr.mxu0 0.0
      %1232 = vmatpush1.msra.mxu0 %v1151
      %1233 = vmatprep.subr.mxu0 0.0
      %1234 = vmatpush1.msra.mxu0 %v1152
      %1235 = vmatprep.subr.mxu0 0.0
      %1236 = vmatpush1.msra.mxu0 %v1153
      %1237 = vmatprep.subr.mxu0 0.0
      %1238 = vmatpush1.msra.mxu0 %v1154
      %1239 = vmatprep.subr.mxu0 0.0
      %1240 = vmatpush1.msra.mxu0 %v1155
      %1241 = vmatprep.subr.mxu0 0.0
      %1242 = vmatpush1.msra.mxu0 %v1156
      %1243 = vmatprep.subr.mxu0 0.0
      %1244 = vmatpush1.msra.mxu0 %v1157
      %1245 = vmatprep.subr.mxu0 0.0
      %1246 = vmatpush1.msra.mxu0 %v1158
      %1247 = vmatprep.subr.mxu0 0.0
      %1248 = vmatpush1.msra.mxu0 %v1159
      %1249 = vmatprep.subr.mxu0 0.0
      %1250 = vmatpush1.msra.mxu0 %v1160
      %1251 = vmatprep.subr.mxu0 0.0
      %1252 = vmatpush1.msra.mxu0 %v1161
      %1253 = vmatprep.subr.mxu0 0.0
      %1254 = vmatpush1.msra.mxu0 %v1162
      %1255 = vmatprep.subr.mxu0 0.0
      %1256 = vmatpush1.msra.mxu0 %v1163
      %1257 = vmatprep.subr.mxu0 0.0
      %1258 = vmatpush1.msra.mxu0 %v1164
      %1259 = vmatprep.subr.mxu0 0.0
      %1260 = vmatpush1.msra.mxu0 %v1165
      %1261 = vmatprep.subr.mxu0 0.0
      %1262 = vmatpush1.msra.mxu0 %v1166
      %1263 = vmatprep.mubr.f32.mxu0 %v1066
      %1264 = vmatmul.mubr.f32.gmra.mrb[0].mxu0 %v1064
      %v1265 = vpop.f32.mrb[0].mxu0
      %v1266 = vadd.f32 0.0, %v1265
      %v1267 = vpop.f32.mrb[0].mxu0
      %1268 = vmatprep.mubr.f32.mxu0 %v1070
      %1269 = vmatmul.mubr.f32.gmra.mrb[0].mxu0 %v1068
      %v1270 = vpop.f32.mrb[0].mxu0
      %v1271 = vadd.f32 0.0, %v1270
      %v1272 = vpop.f32.mrb[0].mxu0
      %1273 = vmatprep.mubr.f32.mxu0 %v1076
      %1274 = vmatmul.mubr.f32.gmra.mrb[0].mxu0 %v1074
      %v1275 = vpop.f32.mrb[0].mxu0
      %v1276 = vadd.f32 0.0, %v1275
      %v1277 = vpop.f32.mrb[0].mxu0
      %1278 = vmatprep.mubr.f32.mxu0 %v1080
      %1279 = vmatmul.mubr.f32.gmra.mrb[0].mxu0 %v1078
      %v1280 = vpop.f32.mrb[0].mxu0
      %v1281 = vadd.f32 0.0, %v1280
      %v1282 = vpop.f32.mrb[0].mxu0
      %1283 = vdwg.mxu0
      %1284 = vmatprep.subr.mxu0 0.0
      %1285 = vmatpush1.msra.mxu0 %v1167
      %1286 = vmatprep.subr.mxu0 0.0
      %1287 = vmatpush1.msra.mxu0 %v1168
      %1288 = vmatprep.subr.mxu0 0.0
      %1289 = vmatpush1.msra.mxu0 %v1169
      %1290 = vmatprep.subr.mxu0 0.0
      %1291 = vmatpush1.msra.mxu0 %v1170
      %1292 = vmatprep.subr.mxu0 0.0
      %1293 = vmatpush1.msra.mxu0 %v1171
      %1294 = vmatprep.subr.mxu0 0.0
      %1295 = vmatpush1.msra.mxu0 %v1172
      %1296 = vmatprep.subr.mxu0 0.0
      %1297 = vmatpush1.msra.mxu0 %v1173
      %1298 = vmatprep.subr.mxu0 0.0
      %1299 = vmatpush1.msra.mxu0 %v1174
      %1300 = vmatprep.subr.mxu0 0.0
      %1301 = vmatpush1.msra.mxu0 %v1175
      %1302 = vmatprep.subr.mxu0 0.0
      %1303 = vmatpush1.msra.mxu0 %v1176
      %1304 = vmatprep.subr.mxu0 0.0
      %1305 = vmatpush1.msra.mxu0 %v1177
      %1306 = vmatprep.subr.mxu0 0.0
      %1307 = vmatpush1.msra.mxu0 %v1178
      %1308 = vmatprep.subr.mxu0 0.0
      %1309 = vmatpush1.msra.mxu0 %v1179
      %1310 = vmatprep.subr.mxu0 0.0
      %1311 = vmatpush1.msra.mxu0 %v1180
      %1312 = vmatprep.subr.mxu0 0.0
      %1313 = vmatpush1.msra.mxu0 %v1181
      %1314 = vmatprep.subr.mxu0 0.0
      %1315 = vmatpush1.msra.mxu0 %v1182
      %1316 = vmatprep.subr.mxu0 0.0
      %1317 = vmatpush1.msra.mxu0 %v1183
      %1318 = vmatprep.subr.mxu0 0.0
      %1319 = vmatpush1.msra.mxu0 %v1184
      %1320 = vmatprep.subr.mxu0 0.0
      %1321 = vmatpush1.msra.mxu0 %v1185
      %1322 = vmatprep.subr.mxu0 0.0
      %1323 = vmatpush1.msra.mxu0 %v1186
      %1324 = vmatprep.subr.mxu0 0.0
      %1325 = vmatpush1.msra.mxu0 %v1187
      %1326 = vmatprep.subr.mxu0 0.0
      %1327 = vmatpush1.msra.mxu0 %v1188
      %1328 = vmatprep.subr.mxu0 0.0
      %1329 = vmatpush1.msra.mxu0 %v1189
      %1330 = vmatprep.subr.mxu0 0.0
      %1331 = vmatpush1.msra.mxu0 %v1190
      %1332 = vmatprep.subr.mxu0 0.0
      %1333 = vmatpush1.msra.mxu0 %v1191
      %1334 = vmatprep.subr.mxu0 0.0
      %1335 = vmatpush1.msra.mxu0 %v1192
      %1336 = vmatprep.subr.mxu0 0.0
      %1337 = vmatpush1.msra.mxu0 %v1193
      %1338 = vmatprep.subr.mxu0 0.0
      %1339 = vmatpush1.msra.mxu0 %v1194
      %1340 = vmatprep.subr.mxu0 0.0
      %1341 = vmatpush1.msra.mxu0 %v1195
      %1342 = vmatprep.subr.mxu0 0.0
      %1343 = vmatpush1.msra.mxu0 %v1196
      %1344 = vmatprep.subr.mxu0 0.0
      %1345 = vmatpush1.msra.mxu0 %v1197
      %1346 = vmatprep.subr.mxu0 0.0
      %1347 = vmatpush1.msra.mxu0 %v1198
      %1348 = vmatprep.mubr.f32.mxu0 %v1119
      %1349 = vmatmul.mubr.f32.gmra.mrb[0].mxu0 %v1117
      %v1350 = vpop.f32.mrb[0].mxu0
      %v1351 = vadd.f32 %v1266, %v1350
      %v1352 = vpop.f32.mrb[0].mxu0
      %1353 = vmatprep.mubr.f32.mxu0 %v1123
      %1354 = vmatmul.mubr.f32.gmra.mrb[0].mxu0 %v1121
      %v1355 = vpop.f32.mrb[0].mxu0
      %v1356 = vadd.f32 %v1271, %v1355
      %v1357 = vpop.f32.mrb[0].mxu0
      %1358 = vmatprep.mubr.f32.mxu0 %v1129
      %1359 = vmatmul.mubr.f32.gmra.mrb[0].mxu0 %v1127
      %v1360 = vpop.f32.mrb[0].mxu0
      %v1361 = vadd.f32 %v1276, %v1360
      %v1362 = vpop.f32.mrb[0].mxu0
      %1363 = vmatprep.mubr.f32.mxu0 %v1133
      %1364 = vmatmul.mubr.f32.gmra.mrb[0].mxu0 %v1131
      %v1365 = vpop.f32.mrb[0].mxu0
      %v1366 = vadd.f32 %v1281, %v1365
      %v1367 = vpop.f32.mrb[0].mxu0
      %1368 = vdwg.mxu0
      %v1369 = vld [vmem:[%s5] sm:$0x3]
      %vm1370 = vcmask 261120
      %v1372 = vsel %vm1370, %v1369, 0
      %1374 = vmatprep.subr.mxu0 0.0
      %1375 = vmatpush1.msra.mxu0 %v1351
      %1376 = vmatprep.subr.mxu0 0.0
      %1377 = vmatpush1.msra.mxu0 %v1356
      %1378 = vmatprep.subr.mxu0 0.0
      %1379 = vmatpush1.msra.mxu0 %v1361
      %1380 = vmatprep.subr.mxu0 0.0
      %1381 = vmatpush1.msra.mxu0 %v1366
      %1382 = vmatprep.subr.mxu0 0.0
      %1383 = vmatpush1.msra.mxu0 0.0
      %1384 = vmatprep.subr.mxu0 0.0
      %1385 = vmatpush1.msra.mxu0 0.0
      %1386 = vmatprep.subr.mxu0 0.0
      %1387 = vmatpush1.msra.mxu0 0.0
      %1388 = vmatprep.subr.mxu0 0.0
      %1389 = vmatpush1.msra.mxu0 0.0
      %1390 = vmatprep.subr.mxu0 0.0
      %1391 = vmatpush1.msra.mxu0 0.0
      %1392 = vmatprep.subr.mxu0 0.0
      %1393 = vmatpush1.msra.mxu0 0.0
      %1394 = vmatprep.subr.mxu0 0.0
      %1395 = vmatpush1.msra.mxu0 0.0
      %1396 = vmatprep.subr.mxu0 0.0
      %1397 = vmatpush1.msra.mxu0 0.0
      %1398 = vmatprep.subr.mxu0 0.0
      %1399 = vmatpush1.msra.mxu0 0.0
      %1400 = vmatprep.subr.mxu0 0.0
      %1401 = vmatpush1.msra.mxu0 0.0
      %1402 = vmatprep.subr.mxu0 0.0
      %1403 = vmatpush1.msra.mxu0 0.0
      %1404 = vmatprep.subr.mxu0 0.0
      %1405 = vmatpush1.msra.mxu0 0.0
      %1406 = vmatprep.subr.mxu0 0.0
      %1407 = vmatpush1.msra.mxu0 0.0
      %1408 = vmatprep.subr.mxu0 0.0
      %1409 = vmatpush1.msra.mxu0 0.0
      %1410 = vmatprep.subr.mxu0 0.0
      %1411 = vmatpush1.msra.mxu0 0.0
      %1412 = vmatprep.subr.mxu0 0.0
      %1413 = vmatpush1.msra.mxu0 0.0
      %1414 = vmatprep.subr.mxu0 0.0
      %1415 = vmatpush1.msra.mxu0 0.0
      %1416 = vmatprep.subr.mxu0 0.0
      %1417 = vmatpush1.msra.mxu0 0.0
      %1418 = vmatprep.subr.mxu0 0.0
      %1419 = vmatpush1.msra.mxu0 0.0
      %1420 = vmatprep.subr.mxu0 0.0
      %1421 = vmatpush1.msra.mxu0 0.0
      %1422 = vmatprep.subr.mxu0 0.0
      %1423 = vmatpush1.msra.mxu0 0.0
      %1424 = vmatprep.subr.mxu0 0.0
      %1425 = vmatpush1.msra.mxu0 0.0
      %1426 = vmatprep.subr.mxu0 0.0
      %1427 = vmatpush1.msra.mxu0 0.0
      %1428 = vmatprep.subr.mxu0 0.0
      %1429 = vmatpush1.msra.mxu0 0.0
      %1430 = vmatprep.subr.mxu0 0.0
      %1431 = vmatpush1.msra.mxu0 0.0
      %1432 = vmatprep.subr.mxu0 0.0
      %1433 = vmatpush1.msra.mxu0 0.0
      %1434 = vmatprep.subr.mxu0 0.0
      %1435 = vmatpush1.msra.mxu0 0.0
      %1436 = vmatprep.subr.mxu0 0.0
      %1437 = vmatpush1.msra.mxu0 0.0
      %1438 = vmatprep.mubr.f32.mxu0 0.0
      %1439 = vmatmul.mubr.f32.gmra.mrb[0].mxu0 %v1372
      %v1440 = vpop.f32.mrb[0].mxu0
      %v1441 = vadd.f32 0.0, %v1440
      %v1442 = vpop.f32.mrb[0].mxu0
      %1443 = vdwg.mxu0
      %v1444 = vmax.f32 %v1441, 0.0
      %v1445 = vld [vmem:[%s6] sm:$0xff]
      %v1446 = vld [vmem:[%s6 + $0x8] sm:$0xff]
      %v1447 = vld [vmem:[%s6 + $0x10] sm:$0xff]
      %v1448 = vld [vmem:[%s6 + $0x18] sm:$0xff]
      %vm1449 = vcmask 15360
      %v1451 = vsel %vm1449, %v1445, 0
      %v1454 = vsel %vm1449, %v1446, 0
      %v1457 = vsel %vm1449, %v1447, 0
      %v1460 = vsel %vm1449, %v1448, 0
      %vm1462 = vcmask 1041408
      %v1464 = vsel %vm1462, %v1444, 0
      %1466 = vmatprep.subr.mxu0 0.0
      %1467 = vmatpush1.msra.mxu0 %v1464
      %1468 = vmatprep.subr.mxu0 0.0
      %1469 = vmatpush1.msra.mxu0 0.0
      %1470 = vmatprep.subr.mxu0 0.0
      %1471 = vmatpush1.msra.mxu0 0.0
      %1472 = vmatprep.subr.mxu0 0.0
      %1473 = vmatpush1.msra.mxu0 0.0
      %1474 = vmatprep.subr.mxu0 0.0
      %1475 = vmatpush1.msra.mxu0 0.0
      %1476 = vmatprep.subr.mxu0 0.0
      %1477 = vmatpush1.msra.mxu0 0.0
      %1478 = vmatprep.subr.mxu0 0.0
      %1479 = vmatpush1.msra.mxu0 0.0
      %1480 = vmatprep.subr.mxu0 0.0
      %1481 = vmatpush1.msra.mxu0 0.0
      %1482 = vmatprep.subr.mxu0 0.0
      %1483 = vmatpush1.msra.mxu0 0.0
      %1484 = vmatprep.subr.mxu0 0.0
      %1485 = vmatpush1.msra.mxu0 0.0
      %1486 = vmatprep.subr.mxu0 0.0
      %1487 = vmatpush1.msra.mxu0 0.0
      %1488 = vmatprep.subr.mxu0 0.0
      %1489 = vmatpush1.msra.mxu0 0.0
      %1490 = vmatprep.subr.mxu0 0.0
      %1491 = vmatpush1.msra.mxu0 0.0
      %1492 = vmatprep.subr.mxu0 0.0
      %1493 = vmatpush1.msra.mxu0 0.0
      %1494 = vmatprep.subr.mxu0 0.0
      %1495 = vmatpush1.msra.mxu0 0.0
      %1496 = vmatprep.subr.mxu0 0.0
      %1497 = vmatpush1.msra.mxu0 0.0
      %1498 = vmatprep.subr.mxu0 0.0
      %1499 = vmatpush1.msra.mxu0 0.0
      %1500 = vmatprep.subr.mxu0 0.0
      %1501 = vmatpush1.msra.mxu0 0.0
      %1502 = vmatprep.subr.mxu0 0.0
      %1503 = vmatpush1.msra.mxu0 0.0
      %1504 = vmatprep.subr.mxu0 0.0
      %1505 = vmatpush1.msra.mxu0 0.0
      %1506 = vmatprep.subr.mxu0 0.0
      %1507 = vmatpush1.msra.mxu0 0.0
      %1508 = vmatprep.subr.mxu0 0.0
      %1509 = vmatpush1.msra.mxu0 0.0
      %1510 = vmatprep.subr.mxu0 0.0
      %1511 = vmatpush1.msra.mxu0 0.0
      %1512 = vmatprep.subr.mxu0 0.0
      %1513 = vmatpush1.msra.mxu0 0.0
      %1514 = vmatprep.subr.mxu0 0.0
      %1515 = vmatpush1.msra.mxu0 0.0
      %1516 = vmatprep.subr.mxu0 0.0
      %1517 = vmatpush1.msra.mxu0 0.0
      %1518 = vmatprep.subr.mxu0 0.0
      %1519 = vmatpush1.msra.mxu0 0.0
      %1520 = vmatprep.subr.mxu0 0.0
      %1521 = vmatpush1.msra.mxu0 0.0
      %1522 = vmatprep.subr.mxu0 0.0
      %1523 = vmatpush1.msra.mxu0 0.0
      %1524 = vmatprep.subr.mxu0 0.0
      %1525 = vmatpush1.msra.mxu0 0.0
      %1526 = vmatprep.subr.mxu0 0.0
      %1527 = vmatpush1.msra.mxu0 0.0
      %1528 = vmatprep.subr.mxu0 0.0
      %1529 = vmatpush1.msra.mxu0 0.0
      %1530 = vmatprep.mubr.f32.mxu0 0.0
      %1531 = vmatmul.mubr.f32.gmra.mrb[0].mxu0 %v1451
      %v1532 = vpop.f32.mrb[0].mxu0
      %v1533 = vadd.f32 0.0, %v1532
      %v1534 = vpop.f32.mrb[0].mxu0
      %1535 = vmatprep.mubr.f32.mxu0 0.0
      %1536 = vmatmul.mubr.f32.gmra.mrb[0].mxu0 %v1454
      %v1537 = vpop.f32.mrb[0].mxu0
      %v1538 = vadd.f32 0.0, %v1537
      %v1539 = vpop.f32.mrb[0].mxu0
      %1540 = vmatprep.mubr.f32.mxu0 0.0
      %1541 = vmatmul.mubr.f32.gmra.mrb[0].mxu0 %v1457
      %v1542 = vpop.f32.mrb[0].mxu0
      %v1543 = vadd.f32 0.0, %v1542
      %v1544 = vpop.f32.mrb[0].mxu0
      %1545 = vmatprep.mubr.f32.mxu0 0.0
      %1546 = vmatmul.mubr.f32.gmra.mrb[0].mxu0 %v1460
      %v1547 = vpop.f32.mrb[0].mxu0
      %v1548 = vadd.f32 0.0, %v1547
      %v1549 = vpop.f32.mrb[0].mxu0
      %1550 = vdwg.mxu0
      %v1551 = vxor.u32 %v1533, 2147483648
      %v1552 = vxor.u32 %v1538, 2147483648
      %v1553 = vxor.u32 %v1543, 2147483648
      %v1554 = vxor.u32 %v1548, 2147483648
      %v1555 = vmul.f32 %v1551, 1.442695
      %v1556 = vpow.pop %v1555
      %v1557 = vmul.f32 %v1552, 1.442695
      %v1558 = vpow.pop %v1557
      %v1559 = vmul.f32 %v1553, 1.442695
      %v1560 = vpow.pop %v1559
      %v1561 = vmul.f32 %v1554, 1.442695
      %v1562 = vpow.pop %v1561
      %v1563 = vadd.f32 %v1556, 1.0
      %v1564 = vadd.f32 %v1558, 1.0
      %v1565 = vadd.f32 %v1560, 1.0
      %v1566 = vadd.f32 %v1562, 1.0
      %v1567 = vrcp.pop %v1563
      %v1568 = vmul.f32 1.0, %v1567
      %v1569 = vrcp.pop %v1564
      %v1570 = vmul.f32 1.0, %v1569
      %v1571 = vrcp.pop %v1565
      %v1572 = vmul.f32 1.0, %v1571
      %v1573 = vrcp.pop %v1566
      %v1574 = vmul.f32 1.0, %v1573
      %1576 = vset.pattern.permute.xlu0 0
      %1577 = vperm.xlu0 %1576, %v1568
      %v1578 = vpop.permute.xlu0 %1577
      %1581 = vset.pattern.permute.xlu0 0
      %1582 = vperm.xlu0 %1581, %v1570
      %v1583 = vpop.permute.xlu0 %1582
      %1586 = vset.pattern.permute.xlu0 0
      %1587 = vperm.xlu0 %1586, %v1572
      %v1588 = vpop.permute.xlu0 %1587
      %1591 = vset.pattern.permute.xlu0 0
      %1592 = vperm.xlu0 %1591, %v1574
      %v1593 = vpop.permute.xlu0 %1592
      %v1595 = vmul.f32 %v1064, %v1578
      %v1596 = vmul.f32 %v1068, %v1583
      %v1597 = vmul.f32 %v1074, %v1588
      %v1598 = vmul.f32 %v1078, %v1593
      %v1599 = vld [vmem:[%s359] sm:$0xff]
      %v1600 = vld [vmem:[%s359 + $0x8] sm:$0xff]
      %v1601 = vld [vmem:[%s359 + $0x10] sm:$0xff]
      %v1602 = vld [vmem:[%s359 + $0x18] sm:$0xff]
      %v1603 = vadd.f32 %v1595, %v1599
      %v1604 = vadd.f32 %v1596, %v1600
      %v1605 = vadd.f32 %v1597, %v1601
      %v1606 = vadd.f32 %v1598, %v1602
      %v1607 = vmax.f32 %v1603, 0.0
      %v1608 = vmax.f32 %v1604, 0.0
      %v1609 = vmax.f32 %v1605, 0.0
      %v1610 = vmax.f32 %v1606, 0.0
      %1611 = vst [vmem:[%s366] sm:$0xff] %v1607
      %1612 = vst [vmem:[%s366 + $0x8] sm:$0xff] %v1608
      %1613 = vst [vmem:[%s366 + $0x10] sm:$0xff] %v1609
      %1614 = vst [vmem:[%s366 + $0x18] sm:$0xff] %v1610
      %1615 = vset.pattern.permute.xlu0 1
      %1616 = vperm.xlu0 %1615, %v1568
      %v1617 = vpop.permute.xlu0 %1616
      %1619 = vset.pattern.permute.xlu0 1
      %1620 = vperm.xlu0 %1619, %v1570
      %v1621 = vpop.permute.xlu0 %1620
      %1623 = vset.pattern.permute.xlu0 1
      %1624 = vperm.xlu0 %1623, %v1572
      %v1625 = vpop.permute.xlu0 %1624
      %1627 = vset.pattern.permute.xlu0 1
      %1628 = vperm.xlu0 %1627, %v1574
      %v1629 = vpop.permute.xlu0 %1628
      %v1631 = vmul.f32 %v1066, %v1617
      %v1632 = vmul.f32 %v1070, %v1621
      %v1633 = vmul.f32 %v1076, %v1625
      %v1634 = vmul.f32 %v1080, %v1629
      %v1635 = vld [vmem:[%s425] sm:$0xff]
      %v1636 = vld [vmem:[%s425 + $0x8] sm:$0xff]
      %v1637 = vld [vmem:[%s425 + $0x10] sm:$0xff]
      %v1638 = vld [vmem:[%s425 + $0x18] sm:$0xff]
      %v1639 = vadd.f32 %v1631, %v1635
      %v1640 = vadd.f32 %v1632, %v1636
      %v1641 = vadd.f32 %v1633, %v1637
      %v1642 = vadd.f32 %v1634, %v1638
      %v1643 = vmax.f32 %v1639, 0.0
      %v1644 = vmax.f32 %v1640, 0.0
      %v1645 = vmax.f32 %v1641, 0.0
      %v1646 = vmax.f32 %v1642, 0.0
      %s1647 = scalar_lea.vmem %s366, 32
      %1648 = vst [vmem:[%s1647] sm:$0xff] %v1643
      %1649 = vst [vmem:[%s1647 + $0x8] sm:$0xff] %v1644
      %1650 = vst [vmem:[%s1647 + $0x10] sm:$0xff] %v1645
      %1651 = vst [vmem:[%s1647 + $0x18] sm:$0xff] %v1646
      %1652 = vset.pattern.permute.xlu0 2
      %1653 = vperm.xlu0 %1652, %v1568
      %v1654 = vpop.permute.xlu0 %1653
      %1656 = vset.pattern.permute.xlu0 2
      %1657 = vperm.xlu0 %1656, %v1570
      %v1658 = vpop.permute.xlu0 %1657
      %1660 = vset.pattern.permute.xlu0 2
      %1661 = vperm.xlu0 %1660, %v1572
      %v1662 = vpop.permute.xlu0 %1661
      %1664 = vset.pattern.permute.xlu0 2
      %1665 = vperm.xlu0 %1664, %v1574
      %v1666 = vpop.permute.xlu0 %1665
      %v1668 = vmul.f32 %v1117, %v1654
      %v1669 = vmul.f32 %v1121, %v1658
      %v1670 = vmul.f32 %v1127, %v1662
      %v1671 = vmul.f32 %v1131, %v1666
      %v1672 = vld [vmem:[%s466] sm:$0xff]
      %v1673 = vld [vmem:[%s466 + $0x8] sm:$0xff]
      %v1674 = vld [vmem:[%s466 + $0x10] sm:$0xff]
      %v1675 = vld [vmem:[%s466 + $0x18] sm:$0xff]
      %v1676 = vadd.f32 %v1668, %v1672
      %v1677 = vadd.f32 %v1669, %v1673
      %v1678 = vadd.f32 %v1670, %v1674
      %v1679 = vadd.f32 %v1671, %v1675
      %v1680 = vmax.f32 %v1676, 0.0
      %v1681 = vmax.f32 %v1677, 0.0
      %v1682 = vmax.f32 %v1678, 0.0
      %v1683 = vmax.f32 %v1679, 0.0
      %s1684 = scalar_lea.vmem %s366, 64
      %1685 = vst [vmem:[%s1684] sm:$0xff] %v1680
      %1686 = vst [vmem:[%s1684 + $0x8] sm:$0xff] %v1681
      %1687 = vst [vmem:[%s1684 + $0x10] sm:$0xff] %v1682
      %1688 = vst [vmem:[%s1684 + $0x18] sm:$0xff] %v1683
      %1689 = vset.pattern.permute.xlu0 3
      %1690 = vperm.xlu0 %1689, %v1568
      %v1691 = vpop.permute.xlu0 %1690
      %1693 = vset.pattern.permute.xlu0 3
      %1694 = vperm.xlu0 %1693, %v1570
      %v1695 = vpop.permute.xlu0 %1694
      %1697 = vset.pattern.permute.xlu0 3
      %1698 = vperm.xlu0 %1697, %v1572
      %v1699 = vpop.permute.xlu0 %1698
      %1701 = vset.pattern.permute.xlu0 3
      %1702 = vperm.xlu0 %1701, %v1574
      %v1703 = vpop.permute.xlu0 %1702
      %v1705 = vmul.f32 %v1119, %v1691
      %v1706 = vmul.f32 %v1123, %v1695
      %v1707 = vmul.f32 %v1129, %v1699
      %v1708 = vmul.f32 %v1133, %v1703
      %v1709 = vld [vmem:[%s507] sm:$0xff]
      %v1710 = vld [vmem:[%s507 + $0x8] sm:$0xff]
      %v1711 = vld [vmem:[%s507 + $0x10] sm:$0xff]
      %v1712 = vld [vmem:[%s507 + $0x18] sm:$0xff]
      %v1713 = vadd.f32 %v1705, %v1709
      %v1714 = vadd.f32 %v1706, %v1710
      %v1715 = vadd.f32 %v1707, %v1711
      %v1716 = vadd.f32 %v1708, %v1712
      %v1717 = vmax.f32 %v1713, 0.0
      %v1718 = vmax.f32 %v1714, 0.0
      %v1719 = vmax.f32 %v1715, 0.0
      %v1720 = vmax.f32 %v1716, 0.0
      %s1721 = scalar_lea.vmem %s366, 96
      %1722 = vst [vmem:[%s1721] sm:$0xff] %v1717
      %1723 = vst [vmem:[%s1721 + $0x8] sm:$0xff] %v1718
      %1724 = vst [vmem:[%s1721 + $0x10] sm:$0xff] %v1719
      %1725 = vst [vmem:[%s1721 + $0x18] sm:$0xff] %v1720
      %s1726 = smul.u32 4, %s21
      %p1727 = scmp.lt.s32.totalorder %s1726, 7
      %s1728 = scalar_select %p1727, %s1726, 7
      %s1729 = smul.addr %s1728, 4
      %s1730 = smul.addr %s1729, 8
      %s1731 = scalar_lea.vmem %s10, %s1730
      // Predicated region
      $region61: #{_forward_impl.1} parent=59 // pred_check
        %p1732 = pneg %p254
      $region62: #{_forward_impl.1} parent=59 // pred_check_branch
        %1734 = sbr.rel (%p1732) target = $region64
      $region63: #{_forward_impl.1} parent=59 // pred_region
        %s1735 = smul.u32 4, %s21
      $region64: #{_forward_impl.1} parent=59 // pred_fallthru
        _
    $region60: #{_forward_impl.1} parent=5 // pred_fallthru
      _
    %p1736 = scmp.le.s32.totalorder 2, %s16
    // Predicated region
    $region65: #{_forward_impl.1} parent=5 // pred_check
      %p1737 = pneg %p1736
    $region66: #{_forward_impl.1} parent=5 // pred_check_branch
      %1739 = sbr.rel (%p1737) target = $region68
    $region67: #{_forward_impl.1} parent=5 // pred_region
      %s1740 = ssub.s32 %s16, 2
      // Predicated region
      $region69: #{_forward_impl.1} parent=67 // pred_check
        %p1741 = pneg %p260
      $region70: #{_forward_impl.1} parent=67 // pred_check_branch
        %1743 = sbr.rel (%p1741) target = $region72
      $region71: #{_forward_impl.1} parent=67 // pred_region
        %s1744 = smul.u32 4, %s22
        %p1745 = scmp.lt.s32.totalorder %s1744, 7
        %s1746 = scalar_select %p1745, %s1744, 7
        %s1747 = smul.addr %s1746, 4
        %s1748 = smul.addr %s1747, 8
        %s1749 = scalar_lea.vmem %s10, %s1748
      $region72: #{_forward_impl.1} parent=67 // pred_fallthru
        _
    $region68: #{_forward_impl.1} parent=5 // pred_fallthru
      _
  $region6: #{_forward_impl.1} parent=0 // loop_footer
    %s20 = sadd.s32 1, %s16
  $region7: #{_forward_impl.1} parent=0 // loop_footer_branch
    %15 = sbr.rel target = $region3
  $region8: #{_forward_impl.1} parent=0 // loop_exit
    _

</llo_original>
